<compile_context>
chip_gen: v7x
topology: tpu7x:2x2x1
jax: 0.10.0
libtpu: 0.0.40
codegen_flags: <defaults>
</compile_context>

<pallas_src>
import functools

import numpy as np
import jax
import jax.numpy as jnp
from jax.experimental import pallas as pl
from jax.experimental.pallas import tpu as pltpu

EPS = 1e-5  # PyTorch BatchNorm default


def _round_up(x, m):
    return (x + m - 1) // m * m


# ---------------------------------------------------------------------------
# Phase 1 kernel: N-tiled accumulation of A = q^T v, softmax at the last
# tile, then fold node_k (+ its bias, carried as row `plane_pad` of wk_aug)
# and the fused output weights through A:
#     M_b    = Wk @ softmax(A) @ W_fused
#     bias_b = bk @ softmax(A) @ W_fused + b_fused
# ---------------------------------------------------------------------------
def _gcn_phase1_kernel(x_ref, wq_ref, bq_ref, wv_ref, bv_ref,
                       wk_aug_ref, wf_ref, bf_ref,
                       m_ref, bias_ref, acc_ref,
                       *, inter_real, inter_pad, plane_pad,
                       n_real, n_pad, tn, approx_recip):
    n_idx = pl.program_id(1)

    @pl.when(n_idx == 0)
    def _init():
        acc_ref[...] = jnp.zeros_like(acc_ref)

    xb = x_ref[0]                                          # (tn, plane_pad)
    # 1x1 conv projections == channel matmuls (compute dtype in, f32 out)
    q = jnp.dot(xb, wq_ref[...], preferred_element_type=jnp.float32) + bq_ref[...]
    v = jnp.dot(xb, wv_ref[...], preferred_element_type=jnp.float32) + bv_ref[...]

    if n_pad > n_real:  # static: zero the contribution of padded pixels
        row = jax.lax.broadcasted_iota(jnp.int32, q.shape, 0) + n_idx * tn
        q = jnp.where(row < n_real, q, 0.0)

    # A += q^T v  (contract over the spatial tile), f32 accumulation
    acc_ref[...] += jax.lax.dot_general(
        q.astype(xb.dtype), v.astype(xb.dtype),
        (((0,), (0,)), ((), ())),
        preferred_element_type=jnp.float32)

    @pl.when(n_idx == pl.num_programs(1) - 1)
    def _finalize():
        a = acc_ref[...]                                   # (inter_pad, inter_pad)
        if inter_pad > inter_real:  # static: mask padded channel columns
            col = jax.lax.broadcasted_iota(jnp.int32, a.shape, 1)
            a = jnp.where(col < inter_real, a, -1e30)
        # softmax over the last dim (torch Softmax(dim=2)), f32
        a = a - jnp.max(a, axis=-1, keepdims=True)
        e = jnp.exp(a)
        a = e * pl.reciprocal(jnp.sum(e, axis=-1, keepdims=True),
                              approx=approx_recip)
        # rows [0, plane_pad) of wk_aug hold Wk^T, row plane_pad holds bk
        maw = jnp.dot(wk_aug_ref[...], a, preferred_element_type=jnp.float32)
        m_all = jnp.dot(maw, wf_ref[...], preferred_element_type=jnp.float32)
        m_ref[0] = m_all[:plane_pad, :].astype(m_ref.dtype)
        bias_ref[0] = m_all[plane_pad:plane_pad + 1, :] + bf_ref[...]


# ---------------------------------------------------------------------------
# Phase 2 kernel: out = relu(x @ M_b + bias_b + x), fully parallel grid.
# ---------------------------------------------------------------------------
def _gcn_phase2_kernel(x_ref, m_ref, bias_ref, out_ref):
    xb = x_ref[0]                                          # (tn, plane_pad)
    o = jnp.dot(xb, m_ref[0], preferred_element_type=jnp.float32)
    o = o + bias_ref[0] + xb.astype(jnp.float32)           # bias + residual
    out_ref[0] = jnp.maximum(o, 0.0)


# ---------------------------------------------------------------------------
# Wrapper: NCHW <-> (B, N, C) plumbing, padding, parameter folding, kernels.
# ---------------------------------------------------------------------------
def spatial_gcn_pallas(x_nchw, p, *, compute_dtype=jnp.bfloat16, tn_max=512):
    f32 = jnp.float32
    b, plane, h, w = x_nchw.shape
    inter = plane // 2
    n = h * w

    plane_pad = _round_up(plane, 128)          # lane-dense channel dims
    inter_pad = _round_up(inter, 128)
    tn = min(tn_max, _round_up(n, 8))          # spatial tile (sublane axis)
    n_pad = _round_up(n, tn)
    n_tiles = n_pad // tn

    # NCHW -> (B, N, C), pad spatial + channels, cast for the MXU
    x = jnp.transpose(x_nchw, (0, 2, 3, 1)).reshape(b, n, plane).astype(f32)
    x = jnp.pad(x, ((0, 0), (0, n_pad - n), (0, plane_pad - plane)))
    x = x.astype(compute_dtype)

    def pad2(a, rows, cols):
        return jnp.pad(a.astype(f32),
                       ((0, rows - a.shape[0]), (0, cols - a.shape[1])))

    # 1x1 conv projections -> (plane, inter) matmul weights + row biases
    wq = pad2(p['wq'][:, :, 0, 0].T, plane_pad, inter_pad)
    wv = pad2(p['wv'][:, :, 0, 0].T, plane_pad, inter_pad)
    bq = pad2(p['bq'].reshape(1, inter), 1, inter_pad)
    bv = pad2(p['bv'].reshape(1, inter), 1, inter_pad)

    # node_k weight, with its bias appended as row `plane_pad` so the whole
    # k-path fold is one well-shaped matmul inside the kernel.
    wk_aug = jnp.zeros((plane_pad + 8, inter_pad), f32)
    wk_aug = wk_aug.at[:plane, :inter].set(p['wk'][:, :, 0, 0].T.astype(f32))
    wk_aug = wk_aug.at[plane_pad, :inter].set(p['bk'].astype(f32))

    # fold conv_wg + bn_wg + out-conv + bn_out into one (inter, plane) weight
    swg = p['wg_gamma'] / jnp.sqrt(p['wg_var'] + EPS)
    bwg = p['wg_beta'] - p['wg_mean'] * swg
    so = p['o_gamma'] / jnp.sqrt(p['o_var'] + EPS)
    bo = (p['bo'] - p['o_mean']) * so + p['o_beta']
    wg_s = p['wg'][:, :, 0].T * swg[None, :]               # (inter, inter)
    wo_s = p['wo'][:, :, 0, 0].T * so[None, :]             # (inter, plane)
    w_fused = pad2(wg_s @ wo_s, inter_pad, plane_pad)
    b_fused = pad2(bwg[None, :] @ wo_s + bo[None, :], 1, plane_pad)

    wq_c = wq.astype(compute_dtype)
    wv_c = wv.astype(compute_dtype)

    kern1 = functools.partial(
        _gcn_phase1_kernel,
        inter_real=inter, inter_pad=inter_pad, plane_pad=plane_pad,
        n_real=n, n_pad=n_pad, tn=tn,
        approx_recip=(compute_dtype != jnp.float32))

    m_b, bias_b = pl.pallas_call(
        kern1,
        out_shape=(jax.ShapeDtypeStruct((b, plane_pad, plane_pad), compute_dtype),
                   jax.ShapeDtypeStruct((b, 1, plane_pad), f32)),
        grid_spec=pltpu.PrefetchScalarGridSpec(
            num_scalar_prefetch=0,
            grid=(b, n_tiles),
            in_specs=[
                pl.BlockSpec((1, tn, plane_pad), lambda i, j: (i, j, 0)),
                pl.BlockSpec((plane_pad, inter_pad), lambda i, j: (0, 0)),
                pl.BlockSpec((1, inter_pad), lambda i, j: (0, 0)),
                pl.BlockSpec((plane_pad, inter_pad), lambda i, j: (0, 0)),
                pl.BlockSpec((1, inter_pad), lambda i, j: (0, 0)),
                pl.BlockSpec((plane_pad + 8, inter_pad), lambda i, j: (0, 0)),
                pl.BlockSpec((inter_pad, plane_pad), lambda i, j: (0, 0)),
                pl.BlockSpec((1, plane_pad), lambda i, j: (0, 0)),
            ],
            out_specs=(pl.BlockSpec((1, plane_pad, plane_pad), lambda i, j: (i, 0, 0)),
                       pl.BlockSpec((1, 1, plane_pad), lambda i, j: (i, 0, 0))),
            scratch_shapes=[pltpu.VMEM((inter_pad, inter_pad), f32)]),
        compiler_params=pltpu.CompilerParams(
            dimension_semantics=("parallel", "arbitrary"),
            vmem_limit_bytes=64 * 1024 * 1024),
    )(x, wq_c, bq, wv_c, bv, wk_aug, w_fused, b_fused)

    out = pl.pallas_call(
        _gcn_phase2_kernel,
        out_shape=jax.ShapeDtypeStruct((b, n_pad, plane_pad), f32),
        grid=(b, n_tiles),
        in_specs=[
            pl.BlockSpec((1, tn, plane_pad), lambda i, j: (i, j, 0)),
            pl.BlockSpec((1, plane_pad, plane_pad), lambda i, j: (i, 0, 0)),
            pl.BlockSpec((1, 1, plane_pad), lambda i, j: (i, 0, 0)),
        ],
        out_specs=pl.BlockSpec((1, tn, plane_pad), lambda i, j: (i, j, 0)),
        compiler_params=pltpu.CompilerParams(
            dimension_semantics=("parallel", "parallel"),
            vmem_limit_bytes=64 * 1024 * 1024),
    )(x, m_b, bias_b)

    out = out[:, :n, :plane].reshape(b, h, w, plane)
    return jnp.transpose(out, (0, 3, 1, 2))


# ---------------------------------------------------------------------------
# Pure-JAX reference mirroring the PyTorch code (NCHW), for verification.
# ---------------------------------------------------------------------------
def spatial_gcn_reference(x, p):
    b, C, h, w = x.shape
    c = C // 2

    def conv1x1(t, wgt, bias):
        y = jnp.einsum('bihw,oi->bohw', t, wgt[:, :, 0, 0])
        if bias is not None:
            y = y + bias[None, :, None, None]
        return y

    nk = conv1x1(x, p['wk'], p['bk'])
    nv = conv1x1(x, p['wv'], p['bv'])
    nq = conv1x1(x, p['wq'], p['bq'])

    nk = nk.reshape(b, c, -1).transpose(0, 2, 1)     # (b, N, c)
    nq = nq.reshape(b, c, -1)                        # (b, c, N)
    nv = nv.reshape(b, c, -1).transpose(0, 2, 1)     # (b, N, c)

    av = jnp.einsum('bcn,bnd->bcd', nq, nv)          # (b, c, c)
    av = jax.nn.softmax(av, axis=2)
    av = jnp.einsum('bnc,bcd->bnd', nk, av)          # (b, N, c)
    av = av.transpose(0, 2, 1)                       # (b, c, N)

    avw = jnp.einsum('oi,bin->bon', p['wg'][:, :, 0], av)
    avw = ((avw - p['wg_mean'][None, :, None])
           / jnp.sqrt(p['wg_var'][None, :, None] + EPS)
           * p['wg_gamma'][None, :, None] + p['wg_beta'][None, :, None])
    avw = avw.reshape(b, c, h, w)

    o = conv1x1(avw, p['wo'], p['bo'])
    o = ((o - p['o_mean'][None, :, None, None])
         / jnp.sqrt(p['o_var'][None, :, None, None] + EPS)
         * p['o_gamma'][None, :, None, None] + p['o_beta'][None, :, None, None])
    return jax.nn.relu(o + x)


# ---------------------------------------------------------------------------
# Deterministic parameter construction (shapes match the nn.Module __init__).
# ---------------------------------------------------------------------------
def make_params(key, plane):
    c = plane // 2
    keys = jax.random.split(key, 16)
    u = lambda k, shape, s=0.2: jax.random.uniform(k, shape, jnp.float32, -s, s)
    return {
        'wk': u(keys[0], (c, plane, 1, 1)), 'bk': u(keys[1], (c,)),
        'wv': u(keys[2], (c, plane, 1, 1)), 'bv': u(keys[3], (c,)),
        'wq': u(keys[4], (c, plane, 1, 1)), 'bq': u(keys[5], (c,)),
        'wg': u(keys[6], (c, c, 1)),
        'wg_gamma': jax.random.uniform(keys[7], (c,), jnp.float32, 0.8, 1.2),
        'wg_beta': u(keys[8], (c,)),
        'wg_mean': u(keys[9], (c,)),
        'wg_var': jax.random.uniform(keys[10], (c,), jnp.float32, 0.5, 1.5),
        'wo': u(keys[11], (plane, c, 1, 1)), 'bo': u(keys[12], (plane,)),
        'o_gamma': jax.random.uniform(keys[13], (plane,), jnp.float32, 0.8, 1.2),
        'o_beta': u(keys[14], (plane,)),
        'o_mean': jnp.zeros((plane,), jnp.float32),
        'o_var': jax.random.uniform(keys[15], (plane,), jnp.float32, 0.5, 1.5),
    }


if __name__ == "__main__":
    B, PLANE, H, W = 2, 8, 16, 16
    key = jax.random.PRNGKey(0)
    kx, kp = jax.random.split(key)
    x = jax.random.normal(kx, (B, PLANE, H, W), jnp.float32)
    params = make_params(kp, PLANE)
    ref = jax.block_until_ready(spatial_gcn_reference(x, params))

    # 1) default perf path: bf16 MXU operands, f32 accumulation / elementwise
    out_bf16 = jax.block_until_ready(
        spatial_gcn_pallas(x, params, compute_dtype=jnp.bfloat16))
    np.testing.assert_allclose(np.asarray(out_bf16), np.asarray(ref),
                               rtol=2e-2, atol=2e-2)

    # 2) f32 path: verifies the folded algebra matches the module tightly
    out_f32 = jax.block_until_ready(
        spatial_gcn_pallas(x, params, compute_dtype=jnp.float32))
    np.testing.assert_allclose(np.asarray(out_f32), np.asarray(ref),
                               rtol=2e-4, atol=2e-4)

    # 3) odd spatial size: exercises the spatial-padding / masking path
    x2 = jax.random.normal(jax.random.PRNGKey(1), (1, PLANE, 5, 7), jnp.float32)
    ref2 = jax.block_until_ready(spatial_gcn_reference(x2, params))
    out2 = jax.block_until_ready(
        spatial_gcn_pallas(x2, params, compute_dtype=jnp.float32))
    np.testing.assert_allclose(np.asarray(out2), np.asarray(ref2),
                               rtol=2e-4, atol=2e-4)

    print("KERNEL_OK")
</pallas_src>

<mosaic_0001>
module attributes {stable_mosaic.version = 11 : i64} {
  func.func @_gcn_phase1_kernel(%arg0: i32, %arg1: i32, %arg2: memref<1x256x128xbf16, #tpu.memory_space<vmem>>, %arg3: memref<128x128xbf16, #tpu.memory_space<vmem>>, %arg4: memref<1x128xf32, #tpu.memory_space<vmem>>, %arg5: memref<128x128xbf16, #tpu.memory_space<vmem>>, %arg6: memref<1x128xf32, #tpu.memory_space<vmem>>, %arg7: memref<136x128xf32, #tpu.memory_space<vmem>>, %arg8: memref<128x128xf32, #tpu.memory_space<vmem>>, %arg9: memref<1x128xf32, #tpu.memory_space<vmem>>, %arg10: memref<1x128x128xbf16, #tpu.memory_space<vmem>>, %arg11: memref<1x1x128xf32, #tpu.memory_space<vmem>>, %arg12: memref<128x128xf32, #tpu.memory_space<vmem>>) attributes {dimension_semantics = [#tpu.dimension_semantics<parallel>, #tpu.dimension_semantics<arbitrary>], iteration_bounds = array<i64: 2, 1>, scalar_prefetch = 0 : i64, scratch_operands = 1 : i64, tpu.core_type = #tpu.core_type<tc>, window_params = [{transform_indices = @transform_0, window_bounds = array<i64: 1, 256, 128>}, {pipeline_mode = #tpu.pipeline_mode<synchronous>, transform_indices = @transform_1, window_bounds = array<i64: 128, 128>}, {pipeline_mode = #tpu.pipeline_mode<synchronous>, transform_indices = @transform_2, window_bounds = array<i64: 1, 128>}, {pipeline_mode = #tpu.pipeline_mode<synchronous>, transform_indices = @transform_3, window_bounds = array<i64: 128, 128>}, {pipeline_mode = #tpu.pipeline_mode<synchronous>, transform_indices = @transform_4, window_bounds = array<i64: 1, 128>}, {pipeline_mode = #tpu.pipeline_mode<synchronous>, transform_indices = @transform_5, window_bounds = array<i64: 136, 128>}, {pipeline_mode = #tpu.pipeline_mode<synchronous>, transform_indices = @transform_6, window_bounds = array<i64: 128, 128>}, {pipeline_mode = #tpu.pipeline_mode<synchronous>, transform_indices = @transform_7, window_bounds = array<i64: 1, 128>}, {transform_indices = @transform_8, window_bounds = array<i64: 1, 128, 128>}, {transform_indices = @transform_9, window_bounds = array<i64: 1, 1, 128>}]} {
    %c0_i32 = arith.constant 0 : i32
    %0 = arith.cmpi eq, %arg1, %c0_i32 : i32
    %1 = arith.extui %0 : i1 to i32
    %c0_i32_0 = arith.constant 0 : i32
    %2 = arith.cmpi ne, %1, %c0_i32_0 : i32
    scf.if %2 {
      %cst_19 = arith.constant 0.000000e+00 : f32
      %24 = vector.broadcast %cst_19 : f32 to vector<128x128xf32>
      %c0_20 = arith.constant 0 : index
      %c0_21 = arith.constant 0 : index
      %25 = vector.load %arg12[%c0_20, %c0_21] : memref<128x128xf32, #tpu.memory_space<vmem>>, vector<128x128xf32>
      tpu.vector_store %arg12[%c0_20, %c0_21], %24 {strides = array<i32>} : memref<128x128xf32, #tpu.memory_space<vmem>>, vector<128x128xf32>,
    } else {
    }
    %c0 = arith.constant 0 : index
    %c0_1 = arith.constant 0 : index
    %c0_2 = arith.constant 0 : index
    %3 = vector.load %arg2[%c0, %c0_1, %c0_2] : memref<1x256x128xbf16, #tpu.memory_space<vmem>>, vector<1x256x128xbf16>
    %4 = vector.shape_cast %3 : vector<1x256x128xbf16> to vector<256x128xbf16>
    %c0_3 = arith.constant 0 : index
    %c0_4 = arith.constant 0 : index
    %5 = vector.load %arg3[%c0_3, %c0_4] : memref<128x128xbf16, #tpu.memory_space<vmem>>, vector<128x128xbf16>
    %cst = arith.constant dense<0.000000e+00> : vector<256x128xf32>
    %6 = tpu.matmul %4, %5, %cst {dimension_numbers = #tpu.dot_dimension_numbers<[1], [0], [0], [1], [0, 0, 1, 1], [], []>} : vector<256x128xbf16>, vector<128x128xbf16>, vector<256x128xf32> -> vector<256x128xf32>
    %c0_5 = arith.constant 0 : index
    %c0_6 = arith.constant 0 : index
    %7 = vector.load %arg4[%c0_5, %c0_6] : memref<1x128xf32, #tpu.memory_space<vmem>>, vector<1x128xf32>
    %8 = vector.broadcast %7 : vector<1x128xf32> to vector<256x128xf32>
    %9 = arith.addf %6, %8 : vector<256x128xf32>
    %c0_7 = arith.constant 0 : index
    %c0_8 = arith.constant 0 : index
    %10 = vector.load %arg5[%c0_7, %c0_8] : memref<128x128xbf16, #tpu.memory_space<vmem>>, vector<128x128xbf16>
    %cst_9 = arith.constant dense<0.000000e+00> : vector<256x128xf32>
    %11 = tpu.matmul %4, %10, %cst_9 {dimension_numbers = #tpu.dot_dimension_numbers<[1], [0], [0], [1], [0, 0, 1, 1], [], []>} : vector<256x128xbf16>, vector<128x128xbf16>, vector<256x128xf32> -> vector<256x128xf32>
    %c0_10 = arith.constant 0 : index
    %c0_11 = arith.constant 0 : index
    %12 = vector.load %arg6[%c0_10, %c0_11] : memref<1x128xf32, #tpu.memory_space<vmem>>, vector<1x128xf32>
    %13 = vector.broadcast %12 : vector<1x128xf32> to vector<256x128xf32>
    %14 = arith.addf %11, %13 : vector<256x128xf32>
    %c0_12 = arith.constant 0 : index
    %c0_13 = arith.constant 0 : index
    %15 = vector.load %arg12[%c0_12, %c0_13] : memref<128x128xf32, #tpu.memory_space<vmem>>, vector<128x128xf32>
    %16 = arith.truncf %9 : vector<256x128xf32> to vector<256x128xbf16>
    %17 = arith.truncf %14 : vector<256x128xf32> to vector<256x128xbf16>
    %cst_14 = arith.constant dense<0.000000e+00> : vector<128x128xf32>
    %18 = tpu.matmul %16, %17, %cst_14 {dimension_numbers = #tpu.dot_dimension_numbers<[0], [0], [1], [1], [0, 1, 1, 1], [], []>} : vector<256x128xbf16>, vector<256x128xbf16>, vector<128x128xf32> -> vector<128x128xf32>
    %19 = arith.addf %15, %18 : vector<128x128xf32>
    %c0_15 = arith.constant 0 : index
    %c0_16 = arith.constant 0 : index
    %20 = vector.load %arg12[%c0_15, %c0_16] : memref<128x128xf32, #tpu.memory_space<vmem>>, vector<128x128xf32>
    tpu.vector_store %arg12[%c0_15, %c0_16], %19 {strides = array<i32>} : memref<128x128xf32, #tpu.memory_space<vmem>>, vector<128x128xf32>,
    %c0_i32_17 = arith.constant 0 : i32
    %21 = arith.cmpi eq, %arg1, %c0_i32_17 : i32
    %22 = arith.extui %21 : i1 to i32
    %c0_i32_18 = arith.constant 0 : i32
    %23 = arith.cmpi ne, %22, %c0_i32_18 : i32
    scf.if %23 {
      %c0_19 = arith.constant 0 : index
      %c0_20 = arith.constant 0 : index
      %24 = vector.load %arg12[%c0_19, %c0_20] : memref<128x128xf32, #tpu.memory_space<vmem>>, vector<128x128xf32>
      %25 = tpu.iota {dimensions = array<i32: 1>} : vector<128x128xi32>
      %c4_i32 = arith.constant 4 : i32
      %26 = vector.broadcast %c4_i32 : i32 to vector<128x128xi32>
      %27 = arith.cmpi slt, %25, %26 : vector<128x128xi32>
      %cst_21 = arith.constant -1.000000e+30 : f32
      %28 = vector.broadcast %cst_21 : f32 to vector<128x128xf32>
      %29 = arith.select %27, %24, %28 : vector<128x128xi1>, vector<128x128xf32>
      %cst_22 = arith.constant dense<0xFF800000> : vector<128xf32>
      %30 = vector.multi_reduction <maximumf>, %29, %cst_22 [1] : vector<128x128xf32> to vector<128xf32>
      %31 = vector.shape_cast %30 : vector<128xf32> to vector<128x1xf32>
      %32 = vector.broadcast %31 : vector<128x1xf32> to vector<128x128xf32>
      %33 = arith.subf %29, %32 : vector<128x128xf32>
      %34 = math.exp %33 : vector<128x128xf32>
      %cst_23 = arith.constant dense<0.000000e+00> : vector<128xf32>
      %35 = vector.multi_reduction <add>, %34, %cst_23 [1] : vector<128x128xf32> to vector<128xf32>
      %36 = vector.shape_cast %35 : vector<128xf32> to vector<128x1xf32>
      %37 = tpu.reciprocal %36 {approx = true} : vector<128x1xf32> -> vector<128x1xf32>
      %38 = vector.broadcast %37 : vector<128x1xf32> to vector<128x128xf32>
      %39 = arith.mulf %34, %38 : vector<128x128xf32>
      %c0_24 = arith.constant 0 : index
      %c0_25 = arith.constant 0 : index
      %40 = vector.load %arg7[%c0_24, %c0_25] : memref<136x128xf32, #tpu.memory_space<vmem>>, vector<136x128xf32>
      %cst_26 = arith.constant dense<0.000000e+00> : vector<136x128xf32>
      %41 = tpu.matmul %40, %39, %cst_26 {dimension_numbers = #tpu.dot_dimension_numbers<[1], [0], [0], [1], [0, 0, 1, 1], [], []>} : vector<136x128xf32>, vector<128x128xf32>, vector<136x128xf32> -> vector<136x128xf32>
      %c0_27 = arith.constant 0 : index
      %c0_28 = arith.constant 0 : index
      %42 = vector.load %arg8[%c0_27, %c0_28] : memref<128x128xf32, #tpu.memory_space<vmem>>, vector<128x128xf32>
      %cst_29 = arith.constant dense<0.000000e+00> : vector<136x128xf32>
      %43 = tpu.matmul %41, %42, %cst_29 {dimension_numbers = #tpu.dot_dimension_numbers<[1], [0], [0], [1], [0, 0, 1, 1], [], []>} : vector<136x128xf32>, vector<128x128xf32>, vector<136x128xf32> -> vector<136x128xf32>
      %44 = vector.extract_strided_slice %43 {offsets = [0, 0], sizes = [128, 128], strides = [1, 1]} : vector<136x128xf32> to vector<128x128xf32>
      %45 = arith.truncf %44 : vector<128x128xf32> to vector<128x128xbf16>
      %c0_30 = arith.constant 0 : index
      %c0_31 = arith.constant 0 : index
      %c0_32 = arith.constant 0 : index
      %46 = vector.load %arg10[%c0_30, %c0_31, %c0_32] : memref<1x128x128xbf16, #tpu.memory_space<vmem>>, vector<1x128x128xbf16>
      %47 = vector.shape_cast %46 : vector<1x128x128xbf16> to vector<128x128xbf16>
      %48 = vector.shape_cast %45 : vector<128x128xbf16> to vector<1x128x128xbf16>
      tpu.vector_store %arg10[%c0_30, %c0_31, %c0_32], %48 {strides = array<i32>} : memref<1x128x128xbf16, #tpu.memory_space<vmem>>, vector<1x128x128xbf16>,
      %49 = vector.extract_strided_slice %43 {offsets = [128, 0], sizes = [1, 128], strides = [1, 1]} : vector<136x128xf32> to vector<1x128xf32>
      %c0_33 = arith.constant 0 : index
      %c0_34 = arith.constant 0 : index
      %50 = vector.load %arg9[%c0_33, %c0_34] : memref<1x128xf32, #tpu.memory_space<vmem>>, vector<1x128xf32>
      %51 = arith.addf %49, %50 : vector<1x128xf32>
      %c0_35 = arith.constant 0 : index
      %c0_36 = arith.constant 0 : index
      %c0_37 = arith.constant 0 : index
      %52 = vector.load %arg11[%c0_35, %c0_36, %c0_37] : memref<1x1x128xf32, #tpu.memory_space<vmem>>, vector<1x1x128xf32>
      %53 = vector.shape_cast %52 : vector<1x1x128xf32> to vector<1x128xf32>
      %54 = vector.shape_cast %51 : vector<1x128xf32> to vector<1x1x128xf32>
      tpu.vector_store %arg11[%c0_35, %c0_36, %c0_37], %54 {strides = array<i32>} : memref<1x1x128xf32, #tpu.memory_space<vmem>>, vector<1x1x128xf32>,
    } else {
    }
    return
  }
  func.func @transform_0(%arg0: i32, %arg1: i32) -> (i32, i32, i32) {
    %c0_i32 = arith.constant 0 : i32
    %c0_i32_0 = arith.constant 0 : i32
    return %arg0, %arg1, %c0_i32 : i32, i32, i32
  }
  func.func @transform_1(%arg0: i32, %arg1: i32) -> (i32, i32) {
    %c0_i32 = arith.constant 0 : i32
    %c0_i32_0 = arith.constant 0 : i32
    %c0_i32_1 = arith.constant 0 : i32
    return %c0_i32, %c0_i32_0 : i32, i32
  }
  func.func @transform_2(%arg0: i32, %arg1: i32) -> (i32, i32) {
    %c0_i32 = arith.constant 0 : i32
    %c0_i32_0 = arith.constant 0 : i32
    %c0_i32_1 = arith.constant 0 : i32
    return %c0_i32, %c0_i32_0 : i32, i32
  }
  func.func @transform_3(%arg0: i32, %arg1: i32) -> (i32, i32) {
    %c0_i32 = arith.constant 0 : i32
    %c0_i32_0 = arith.constant 0 : i32
    %c0_i32_1 = arith.constant 0 : i32
    return %c0_i32, %c0_i32_0 : i32, i32
  }
  func.func @transform_4(%arg0: i32, %arg1: i32) -> (i32, i32) {
    %c0_i32 = arith.constant 0 : i32
    %c0_i32_0 = arith.constant 0 : i32
    %c0_i32_1 = arith.constant 0 : i32
    return %c0_i32, %c0_i32_0 : i32, i32
  }
  func.func @transform_5(%arg0: i32, %arg1: i32) -> (i32, i32) {
    %c0_i32 = arith.constant 0 : i32
    %c0_i32_0 = arith.constant 0 : i32
    %c0_i32_1 = arith.constant 0 : i32
    return %c0_i32, %c0_i32_0 : i32, i32
  }
  func.func @transform_6(%arg0: i32, %arg1: i32) -> (i32, i32) {
    %c0_i32 = arith.constant 0 : i32
    %c0_i32_0 = arith.constant 0 : i32
    %c0_i32_1 = arith.constant 0 : i32
    return %c0_i32, %c0_i32_0 : i32, i32
  }
  func.func @transform_7(%arg0: i32, %arg1: i32) -> (i32, i32) {
    %c0_i32 = arith.constant 0 : i32
    %c0_i32_0 = arith.constant 0 : i32
    %c0_i32_1 = arith.constant 0 : i32
    return %c0_i32, %c0_i32_0 : i32, i32
  }
  func.func @transform_8(%arg0: i32, %arg1: i32) -> (i32, i32, i32) {
    %c0_i32 = arith.constant 0 : i32
    %c0_i32_0 = arith.constant 0 : i32
    %c0_i32_1 = arith.constant 0 : i32
    return %arg0, %c0_i32, %c0_i32_0 : i32, i32, i32
  }
  func.func @transform_9(%arg0: i32, %arg1: i32) -> (i32, i32, i32) {
    %c0_i32 = arith.constant 0 : i32
    %c0_i32_0 = arith.constant 0 : i32
    %c0_i32_1 = arith.constant 0 : i32
    return %arg0, %c0_i32, %c0_i32_0 : i32, i32, i32
  }
}

</mosaic_0001>

<llo_original>
// kernel: tpu_custom_call.1
$region0: #{tpu_custom_call.1}
  #allocation0 [shape = 'u32[]', space=smem, size = 0x4, offset = 0x4, fixed_abs, tag = 'smem constant byte address 0x4 - core index']
  #allocation1 [shape = 'u32[144,128]{1,0:T(1,128)}', space=vmem, size = 0x12000, scoped, tag = 'internal scratch']
  #allocation2 [shape = 'f32[128,128]{1,0:T(8,128)}', space=vmem, size = 0x10000, scoped, tag = 'scratch operand']
  %s0 = inlined_call_operand.hbm [shape: bf16[2,256,128], index: 0, kind: input, shape index: {}]
  %s1 = inlined_call_operand.hbm [shape: bf16[128,128], index: 1, kind: input, shape index: {}]
  %s2 = inlined_call_operand.hbm [shape: f32[1,128], index: 2, kind: input, shape index: {}]
  %s3 = inlined_call_operand.hbm [shape: bf16[128,128], index: 3, kind: input, shape index: {}]
  %s4 = inlined_call_operand.hbm [shape: f32[1,128], index: 4, kind: input, shape index: {}]
  %s5 = inlined_call_operand.hbm [shape: f32[136,128], index: 5, kind: input, shape index: {}]
  %s6 = inlined_call_operand.hbm [shape: f32[128,128], index: 6, kind: input, shape index: {}]
  %s7 = inlined_call_operand.hbm [shape: f32[1,128], index: 7, kind: input, shape index: {}]
  %s8 = inlined_call_operand.hbm [shape: bf16[2,128,128], index: 8, kind: output, shape index: {0}]
  %s9 = inlined_call_operand.hbm [shape: f32[2,1,128], index: 9, kind: output, shape index: {1}]
  %10 = xla_tuple %s8, %s9
  %s11 = sld [smem:[#allocation0]]
  $region113: #{tpu_custom_call.1} parent=0
    _
  %s13 = ssub.s32 1, %s11
  %s14 = scalar_select 0, %s13, %s11
  $region1: #{tpu_custom_call.1} parent=0
    #allocation3 [shape = 'u8[131072]{0}', space=vmem, size = 0x20000, scoped, tag = 'input window, operand 0']
    #allocation4 [shape = 's32[2]{0}', space=sflag, size = 0x8, scoped, tag = 'scoped memory for tpu_custom_call.1']
    #allocation5 [shape = 's32[2]{0}', space=sflag, size = 0x8, scoped, tag = 'scoped memory for tpu_custom_call.1']
    #allocation6 [shape = 'u8[32768]{0}', space=vmem, size = 0x8000, scoped, tag = 'input window, operand 1, single buffered']
    #allocation7 [shape = 's32[1]{0}', space=sflag, size = 0x4, scoped, tag = 'scoped memory for tpu_custom_call.1']
    #allocation8 [shape = 'u8[512]{0}', space=vmem, size = 0x400, scoped, tag = 'input window, operand 2, single buffered']
    #allocation9 [shape = 'u8[32768]{0}', space=vmem, size = 0x8000, scoped, tag = 'input window, operand 3, single buffered']
    #allocation10 [shape = 's32[1]{0}', space=sflag, size = 0x4, scoped, tag = 'scoped memory for tpu_custom_call.1']
    #allocation11 [shape = 'u8[512]{0}', space=vmem, size = 0x400, scoped, tag = 'input window, operand 4, single buffered']
    #allocation12 [shape = 'u8[69632]{0}', space=vmem, size = 0x11000, scoped, tag = 'input window, operand 5, single buffered']
    #allocation13 [shape = 's32[1]{0}', space=sflag, size = 0x4, scoped, tag = 'scoped memory for tpu_custom_call.1']
    #allocation14 [shape = 'u8[65536]{0}', space=vmem, size = 0x10000, scoped, tag = 'input window, operand 6, single buffered']
    #allocation15 [shape = 'u8[512]{0}', space=vmem, size = 0x400, scoped, tag = 'input window, operand 7, single buffered']
    #allocation16 [shape = 's32[1]{0}', space=sflag, size = 0x4, scoped, tag = 'scoped memory for tpu_custom_call.1']
    #allocation17 [shape = 'u8[65536]{0}', space=vmem, size = 0x10000, scoped, tag = 'output window, operand 0']
    #allocation18 [shape = 'u8[1024]{0}', space=vmem, size = 0x400, scoped, tag = 'output window, operand 1']
    #allocation19 [shape = 's32[2]{0}', space=sflag, size = 0x8, scoped, tag = 'scoped memory for tpu_custom_call.1']
    %15 = vsyncpa [#allocation4], 0
    %s16 = scalar_lea.sflag [#allocation4], 1
    %17 = vsyncpa %s16, 0
    %18 = vsyncpa [#allocation7], 0
    %19 = vsyncpa [#allocation10], 0
    %20 = vsyncpa [#allocation13], 0
    %21 = vsyncpa [#allocation16], 0
    %22 = vsyncpa [#allocation5], 0
    %s23 = scalar_lea.sflag [#allocation5], 1
    %24 = vsyncpa %s23, 0
    %25 = vsyncpa [#allocation19], 0
    %s26 = scalar_lea.sflag [#allocation19], 1
    %27 = vsyncpa %s26, 0
    loop: start=0, step=1, limit=4
    $region2: #{tpu_custom_call.1} parent=1 // loop_pre_header
      _
    $region3: #{tpu_custom_call.1} parent=1 // loop_header
      %s29 = sphi 0, %s33
      %p30 = scmp.ge.s32.totalorder %s29, 4
      %s36 = sphi 0, %s48
      %s37 = sphi 0, %s44
      %s38 = sphi 0, %s36
      %s39 = sphi 0, %s37
      %s40 = sphi 0, %s38
      %s41 = sphi 0, %s39
      %s53 = sphi 0, %s55
      %s56 = sphi 0, %s53
      %s57 = sphi 0, %s56
      %s73 = sphi 0, %s57
      %s77 = sphi 0, %s77
      %s79 = sphi 0, %s77
      %s80 = sphi 0, %s79
      %s94 = sphi 0, %s80
      %s98 = sphi 0, %s98
      %s100 = sphi 0, %s98
      %s101 = sphi 0, %s100
      %s115 = sphi 0, %s101
      %s119 = sphi 0, %s119
      %s121 = sphi 0, %s119
      %s122 = sphi 0, %s121
      %s136 = sphi 0, %s122
      %s140 = sphi 0, %s140
      %s142 = sphi 0, %s140
      %s143 = sphi 0, %s142
      %s157 = sphi 0, %s143
      %s161 = sphi 0, %s161
      %s163 = sphi 0, %s161
      %s164 = sphi 0, %s163
      %s178 = sphi 0, %s164
      %s182 = sphi 0, %s182
      %s184 = sphi 0, %s182
      %s185 = sphi 0, %s184
      %s199 = sphi 0, %s185
      %s203 = sphi 0, %s203
      %s205 = sphi 0, %s203
      %s206 = sphi 0, %s205
      %s220 = sphi 0, %s206
      %s226 = sphi 0, %s228
      %s229 = sphi 0, %s226
      %s230 = sphi 0, %s229
      %s246 = sphi 0, %s230
      %s252 = sphi 0, %s254
      %s255 = sphi 0, %s252
      %s256 = sphi 0, %s255
      %s272 = sphi 0, %s256
    $region4: #{tpu_custom_call.1} parent=1 // loop_header_branch
      %32 = sbr.rel (%p30) target = $region8
    $region5: #{tpu_custom_call.1} parent=1 // loop_body
      %s34 = ssub.s32 %s29, 1
      %s35 = ssub.s32 %s29, 2
      %s42 = sadd.s32 1, %s37
      %p43 = scmp.ge.s32.totalorder %s42, 1
      %s44 = scalar_select %p43, 0, %s42
      %s45 = sadd.s32 1, %s36
      %s46 = scalar_select %p43, %s45, %s36
      %p47 = scmp.ge.s32.totalorder %s46, 2
      %s48 = scalar_select %p47, 0, %s46
      %s49 = ssub.s32 %s36, %s48
      %s50 = ssub.s32 %s37, %s44
      %s51 = sor.u32 %s49, %s50
      %p52 = scmp.eq.s32.totalorder %s51, 0
      %s54 = sadd.s32 %s53, 1
      %s55 = scalar_select %p52, %s53, %s54
      %p58 = pneg %p52
      %p59 = scmp.eq.s32.totalorder %s29, 1
      %p60 = por %p58, %p59
      %p61 = scmp.ne.s32.totalorder %s53, %s56
      %p62 = scmp.eq.s32.totalorder %s29, 0
      %p63 = por %p61, %p62
      %p64 = scmp.ne.s32.totalorder %s53, %s56
      %p65 = scmp.eq.s32.totalorder %s34, 1
      %p66 = por %p64, %p65
      %p67 = scmp.ne.s32.totalorder %s56, %s57
      %p68 = scmp.eq.s32.totalorder %s34, 0
      %p69 = por %p67, %p68
      %p70 = scmp.ne.s32.totalorder %s56, %s57
      %p71 = scmp.eq.s32.totalorder %s35, 1
      %p72 = por %p70, %p71
      %p74 = scmp.ne.s32.totalorder %s57, %s73
      %p75 = scmp.eq.s32.totalorder %s35, 0
      %p76 = por %p74, %p75
      %s78 = sadd.s32 %s77, 1
      %p81 = scmp.eq.s32.totalorder %s29, 1
      %p82 = scmp.ne.s32.totalorder %s77, %s79
      %p83 = scmp.eq.s32.totalorder %s29, 0
      %p84 = por %p82, %p83
      %p85 = scmp.ne.s32.totalorder %s77, %s79
      %p86 = scmp.eq.s32.totalorder %s34, 1
      %p87 = por %p85, %p86
      %p88 = scmp.ne.s32.totalorder %s79, %s80
      %p89 = scmp.eq.s32.totalorder %s34, 0
      %p90 = por %p88, %p89
      %p91 = scmp.ne.s32.totalorder %s79, %s80
      %p92 = scmp.eq.s32.totalorder %s35, 1
      %p93 = por %p91, %p92
      %p95 = scmp.ne.s32.totalorder %s80, %s94
      %p96 = scmp.eq.s32.totalorder %s35, 0
      %p97 = por %p95, %p96
      %s99 = sadd.s32 %s98, 1
      %p102 = scmp.eq.s32.totalorder %s29, 1
      %p103 = scmp.ne.s32.totalorder %s98, %s100
      %p104 = scmp.eq.s32.totalorder %s29, 0
      %p105 = por %p103, %p104
      %p106 = scmp.ne.s32.totalorder %s98, %s100
      %p107 = scmp.eq.s32.totalorder %s34, 1
      %p108 = por %p106, %p107
      %p109 = scmp.ne.s32.totalorder %s100, %s101
      %p110 = scmp.eq.s32.totalorder %s34, 0
      %p111 = por %p109, %p110
      %p112 = scmp.ne.s32.totalorder %s100, %s101
      %p113 = scmp.eq.s32.totalorder %s35, 1
      %p114 = por %p112, %p113
      %p116 = scmp.ne.s32.totalorder %s101, %s115
      %p117 = scmp.eq.s32.totalorder %s35, 0
      %p118 = por %p116, %p117
      %s120 = sadd.s32 %s119, 1
      %p123 = scmp.eq.s32.totalorder %s29, 1
      %p124 = scmp.ne.s32.totalorder %s119, %s121
      %p125 = scmp.eq.s32.totalorder %s29, 0
      %p126 = por %p124, %p125
      %p127 = scmp.ne.s32.totalorder %s119, %s121
      %p128 = scmp.eq.s32.totalorder %s34, 1
      %p129 = por %p127, %p128
      %p130 = scmp.ne.s32.totalorder %s121, %s122
      %p131 = scmp.eq.s32.totalorder %s34, 0
      %p132 = por %p130, %p131
      %p133 = scmp.ne.s32.totalorder %s121, %s122
      %p134 = scmp.eq.s32.totalorder %s35, 1
      %p135 = por %p133, %p134
      %p137 = scmp.ne.s32.totalorder %s122, %s136
      %p138 = scmp.eq.s32.totalorder %s35, 0
      %p139 = por %p137, %p138
      %s141 = sadd.s32 %s140, 1
      %p144 = scmp.eq.s32.totalorder %s29, 1
      %p145 = scmp.ne.s32.totalorder %s140, %s142
      %p146 = scmp.eq.s32.totalorder %s29, 0
      %p147 = por %p145, %p146
      %p148 = scmp.ne.s32.totalorder %s140, %s142
      %p149 = scmp.eq.s32.totalorder %s34, 1
      %p150 = por %p148, %p149
      %p151 = scmp.ne.s32.totalorder %s142, %s143
      %p152 = scmp.eq.s32.totalorder %s34, 0
      %p153 = por %p151, %p152
      %p154 = scmp.ne.s32.totalorder %s142, %s143
      %p155 = scmp.eq.s32.totalorder %s35, 1
      %p156 = por %p154, %p155
      %p158 = scmp.ne.s32.totalorder %s143, %s157
      %p159 = scmp.eq.s32.totalorder %s35, 0
      %p160 = por %p158, %p159
      %s162 = sadd.s32 %s161, 1
      %p165 = scmp.eq.s32.totalorder %s29, 1
      %p166 = scmp.ne.s32.totalorder %s161, %s163
      %p167 = scmp.eq.s32.totalorder %s29, 0
      %p168 = por %p166, %p167
      %p169 = scmp.ne.s32.totalorder %s161, %s163
      %p170 = scmp.eq.s32.totalorder %s34, 1
      %p171 = por %p169, %p170
      %p172 = scmp.ne.s32.totalorder %s163, %s164
      %p173 = scmp.eq.s32.totalorder %s34, 0
      %p174 = por %p172, %p173
      %p175 = scmp.ne.s32.totalorder %s163, %s164
      %p176 = scmp.eq.s32.totalorder %s35, 1
      %p177 = por %p175, %p176
      %p179 = scmp.ne.s32.totalorder %s164, %s178
      %p180 = scmp.eq.s32.totalorder %s35, 0
      %p181 = por %p179, %p180
      %s183 = sadd.s32 %s182, 1
      %p186 = scmp.eq.s32.totalorder %s29, 1
      %p187 = scmp.ne.s32.totalorder %s182, %s184
      %p188 = scmp.eq.s32.totalorder %s29, 0
      %p189 = por %p187, %p188
      %p190 = scmp.ne.s32.totalorder %s182, %s184
      %p191 = scmp.eq.s32.totalorder %s34, 1
      %p192 = por %p190, %p191
      %p193 = scmp.ne.s32.totalorder %s184, %s185
      %p194 = scmp.eq.s32.totalorder %s34, 0
      %p195 = por %p193, %p194
      %p196 = scmp.ne.s32.totalorder %s184, %s185
      %p197 = scmp.eq.s32.totalorder %s35, 1
      %p198 = por %p196, %p197
      %p200 = scmp.ne.s32.totalorder %s185, %s199
      %p201 = scmp.eq.s32.totalorder %s35, 0
      %p202 = por %p200, %p201
      %s204 = sadd.s32 %s203, 1
      %p207 = scmp.eq.s32.totalorder %s29, 1
      %p208 = scmp.ne.s32.totalorder %s203, %s205
      %p209 = scmp.eq.s32.totalorder %s29, 0
      %p210 = por %p208, %p209
      %p211 = scmp.ne.s32.totalorder %s203, %s205
      %p212 = scmp.eq.s32.totalorder %s34, 1
      %p213 = por %p211, %p212
      %p214 = scmp.ne.s32.totalorder %s205, %s206
      %p215 = scmp.eq.s32.totalorder %s34, 0
      %p216 = por %p214, %p215
      %p217 = scmp.ne.s32.totalorder %s205, %s206
      %p218 = scmp.eq.s32.totalorder %s35, 1
      %p219 = por %p217, %p218
      %p221 = scmp.ne.s32.totalorder %s206, %s220
      %p222 = scmp.eq.s32.totalorder %s35, 0
      %p223 = por %p221, %p222
      %s224 = ssub.s32 %s36, %s48
      %p225 = scmp.eq.s32.totalorder %s224, 0
      %s227 = sadd.s32 %s226, 1
      %s228 = scalar_select %p225, %s226, %s227
      %p231 = pneg %p225
      %p232 = scmp.eq.s32.totalorder %s29, 1
      %p233 = por %p231, %p232
      %p234 = scmp.ne.s32.totalorder %s226, %s229
      %p235 = scmp.eq.s32.totalorder %s29, 0
      %p236 = por %p234, %p235
      %p237 = scmp.ne.s32.totalorder %s226, %s229
      %p238 = scmp.eq.s32.totalorder %s34, 1
      %p239 = por %p237, %p238
      %p240 = scmp.ne.s32.totalorder %s229, %s230
      %p241 = scmp.eq.s32.totalorder %s34, 0
      %p242 = por %p240, %p241
      %p243 = scmp.ne.s32.totalorder %s229, %s230
      %p244 = scmp.eq.s32.totalorder %s35, 1
      %p245 = por %p243, %p244
      %p247 = scmp.ne.s32.totalorder %s230, %s246
      %p248 = scmp.eq.s32.totalorder %s35, 0
      %p249 = por %p247, %p248
      %s250 = ssub.s32 %s36, %s48
      %p251 = scmp.eq.s32.totalorder %s250, 0
      %s253 = sadd.s32 %s252, 1
      %s254 = scalar_select %p251, %s252, %s253
      %p257 = pneg %p251
      %p258 = scmp.eq.s32.totalorder %s29, 1
      %p259 = por %p257, %p258
      %p260 = scmp.ne.s32.totalorder %s252, %s255
      %p261 = scmp.eq.s32.totalorder %s29, 0
      %p262 = por %p260, %p261
      %p263 = scmp.ne.s32.totalorder %s252, %s255
      %p264 = scmp.eq.s32.totalorder %s34, 1
      %p265 = por %p263, %p264
      %p266 = scmp.ne.s32.totalorder %s255, %s256
      %p267 = scmp.eq.s32.totalorder %s34, 0
      %p268 = por %p266, %p267
      %p269 = scmp.ne.s32.totalorder %s255, %s256
      %p270 = scmp.eq.s32.totalorder %s35, 1
      %p271 = por %p269, %p270
      %p273 = scmp.ne.s32.totalorder %s256, %s272
      %p274 = scmp.eq.s32.totalorder %s35, 0
      %p275 = por %p273, %p274
      %p276 = scmp.le.s32.totalorder 1, %s29
      %p277 = scmp.lt.s32.totalorder %s29, 3
      %p278 = pnand %p276, %p277
      %p279 = pneg %p278
      // Predicated region
      $region9: #{tpu_custom_call.1} parent=5 // pred_check
        _
      $region10: #{tpu_custom_call.1} parent=5 // pred_check_branch
        %281 = sbr.rel (%p278) target = $region12
      $region11: #{tpu_custom_call.1} parent=5 // pred_region
        %s282 = ssub.s32 %s29, 1
        // Predicated region
        $region13: #{tpu_custom_call.1} parent=11 // pred_check
          %p283 = pneg %p90
        $region14: #{tpu_custom_call.1} parent=11 // pred_check_branch
          %285 = sbr.rel (%p283) target = $region16
        $region15: #{tpu_custom_call.1} parent=11 // pred_region
          %s287 = ssub.s32 1024, 1024
          %288 = vsyncadd [#allocation7], %s287
          %s289 = sshll.u32 [#allocation6], 4
          %s290 = int_to_ptr.vmem [resolvable:$true] %s289
          %295 = dma.hbm_to_vmem [thread:$0]  %s1, 1024, %s290, [#allocation7], 64, 64, 4
        $region16: #{tpu_custom_call.1} parent=11 // pred_fallthru
          _
        // Predicated region
        $region17: #{tpu_custom_call.1} parent=11 // pred_check
          %p296 = pneg %p111
        $region18: #{tpu_custom_call.1} parent=11 // pred_check_branch
          %298 = sbr.rel (%p296) target = $region20
        $region19: #{tpu_custom_call.1} parent=11 // pred_region
          %s300 = ssub.s32 16, 16
          %301 = vsyncadd [#allocation7], %s300
          %s303 = sshll.u32 [#allocation8], 4
          %s304 = int_to_ptr.vmem [resolvable:$true] %s303
          %306 = dma.hbm_to_vmem [thread:$0]  %s2, 16, %s304, [#allocation7]
        $region20: #{tpu_custom_call.1} parent=11 // pred_fallthru
          _
        // Predicated region
        $region21: #{tpu_custom_call.1} parent=11 // pred_check
          %p307 = pneg %p132
        $region22: #{tpu_custom_call.1} parent=11 // pred_check_branch
          %309 = sbr.rel (%p307) target = $region24
        $region23: #{tpu_custom_call.1} parent=11 // pred_region
          %s311 = ssub.s32 1024, 1024
          %312 = vsyncadd [#allocation10], %s311
          %s313 = sshll.u32 [#allocation9], 4
          %s314 = int_to_ptr.vmem [resolvable:$true] %s313
          %319 = dma.hbm_to_vmem [thread:$0]  %s3, 1024, %s314, [#allocation10], 64, 64, 4
        $region24: #{tpu_custom_call.1} parent=11 // pred_fallthru
          _
        // Predicated region
        $region25: #{tpu_custom_call.1} parent=11 // pred_check
          %p320 = pneg %p153
        $region26: #{tpu_custom_call.1} parent=11 // pred_check_branch
          %322 = sbr.rel (%p320) target = $region28
        $region27: #{tpu_custom_call.1} parent=11 // pred_region
          %s324 = ssub.s32 16, 16
          %325 = vsyncadd [#allocation10], %s324
          %s327 = sshll.u32 [#allocation11], 4
          %s328 = int_to_ptr.vmem [resolvable:$true] %s327
          %330 = dma.hbm_to_vmem [thread:$0]  %s4, 16, %s328, [#allocation10]
        $region28: #{tpu_custom_call.1} parent=11 // pred_fallthru
          _
        // Predicated region
        $region29: #{tpu_custom_call.1} parent=11 // pred_check
          %p331 = pneg %p174
        $region30: #{tpu_custom_call.1} parent=11 // pred_check_branch
          %333 = sbr.rel (%p331) target = $region32
        $region31: #{tpu_custom_call.1} parent=11 // pred_region
          %s335 = ssub.s32 2176, 2176
          %336 = vsyncadd [#allocation13], %s335
          %s337 = sshll.u32 [#allocation12], 4
          %s338 = int_to_ptr.vmem [resolvable:$true] %s337
          %343 = dma.hbm_to_vmem [thread:$0]  %s5, 2176, %s338, [#allocation13], 128, 128, 8
        $region32: #{tpu_custom_call.1} parent=11 // pred_fallthru
          _
        // Predicated region
        $region33: #{tpu_custom_call.1} parent=11 // pred_check
          %p344 = pneg %p195
        $region34: #{tpu_custom_call.1} parent=11 // pred_check_branch
          %346 = sbr.rel (%p344) target = $region36
        $region35: #{tpu_custom_call.1} parent=11 // pred_region
          %s348 = ssub.s32 2048, 2048
          %349 = vsyncadd [#allocation13], %s348
          %s350 = sshll.u32 [#allocation14], 4
          %s351 = int_to_ptr.vmem [resolvable:$true] %s350
          %356 = dma.hbm_to_vmem [thread:$0]  %s6, 2048, %s351, [#allocation13], 128, 128, 8
        $region36: #{tpu_custom_call.1} parent=11 // pred_fallthru
          _
        // Predicated region
        $region37: #{tpu_custom_call.1} parent=11 // pred_check
          %p357 = pneg %p216
        $region38: #{tpu_custom_call.1} parent=11 // pred_check_branch
          %359 = sbr.rel (%p357) target = $region40
        $region39: #{tpu_custom_call.1} parent=11 // pred_region
          %s361 = ssub.s32 16, 16
          %362 = vsyncadd [#allocation16], %s361
          %s364 = sshll.u32 [#allocation15], 4
          %s365 = int_to_ptr.vmem [resolvable:$true] %s364
          %367 = dma.hbm_to_vmem [thread:$0]  %s7, 16, %s365, [#allocation16]
        $region40: #{tpu_custom_call.1} parent=11 // pred_fallthru
          _
      $region12: #{tpu_custom_call.1} parent=5 // pred_fallthru
        _
      %p368 = scmp.lt.s32.totalorder %s29, 2
      // Predicated region
      $region41: #{tpu_custom_call.1} parent=5 // pred_check
        %p369 = pneg %p368
      $region42: #{tpu_custom_call.1} parent=5 // pred_check_branch
        %371 = sbr.rel (%p369) target = $region44
      $region43: #{tpu_custom_call.1} parent=5 // pred_region
        // Predicated region
        $region45: #{tpu_custom_call.1} parent=43 // pred_check
          %p372 = pneg %p63
        $region46: #{tpu_custom_call.1} parent=43 // pred_check_branch
          %374 = sbr.rel (%p372) target = $region48
        $region47: #{tpu_custom_call.1} parent=43 // pred_region
          %s375 = sand.u32 %s53, 1
          %s376 = scalar_lea.sflag [#allocation4], %s375
          %s377 = sand.u32 %s53, 1
          %s378 = smul.addr %s377, 128
          %s379 = scalar_lea.vmem [#allocation3], %s378
          %s380 = smul.u32 32, %s37
          %s382 = ssub.s32 2048, 2048
          %383 = vsyncadd %s376, %s382
          %s384 = smul.addr %s36, 32
          %s385 = sadd.s32 %s380, %s384
          %s386 = smul.addr %s385, 64
          %s387 = scalar_lea.hbm %s0, %s386
          %s388 = sshll.u32 %s379, 4
          %s389 = int_to_ptr.vmem [resolvable:$true] %s388
          %394 = dma.hbm_to_vmem [thread:$0]  %s387, 2048, %s389, %s376, 64, 64, 4
        $region48: #{tpu_custom_call.1} parent=43 // pred_fallthru
          _
      $region44: #{tpu_custom_call.1} parent=5 // pred_fallthru
        _
      %p395 = scmp.le.s32.totalorder 1, %s29
      %p396 = scmp.lt.s32.totalorder %s29, 3
      %p397 = pnand %p395, %p396
      %p398 = pneg %p397
      // Predicated region
      $region49: #{tpu_custom_call.1} parent=5 // pred_check
        _
      $region50: #{tpu_custom_call.1} parent=5 // pred_check_branch
        %400 = sbr.rel (%p397) target = $region52
      $region51: #{tpu_custom_call.1} parent=5 // pred_region
        %s401 = ssub.s32 %s29, 1
        %s402 = sand.u32 %s56, 1
        %s403 = scalar_lea.sflag [#allocation4], %s402
        %s404 = sand.u32 %s56, 1
        %s405 = smul.addr %s404, 128
        %s406 = scalar_lea.vmem [#allocation3], %s405
        // Predicated region
        $region53: #{tpu_custom_call.1} parent=51 // pred_check
          %p407 = pneg %p69
        $region54: #{tpu_custom_call.1} parent=51 // pred_check_branch
          %409 = sbr.rel (%p407) target = $region56
        $region55: #{tpu_custom_call.1} parent=51 // pred_region
          %410 = dma.done %s403, 2048
        $region56: #{tpu_custom_call.1} parent=51 // pred_fallthru
          _
        // Predicated region
        $region57: #{tpu_custom_call.1} parent=51 // pred_check
          %p411 = pneg %p90
        $region58: #{tpu_custom_call.1} parent=51 // pred_check_branch
          %413 = sbr.rel (%p411) target = $region60
        $region59: #{tpu_custom_call.1} parent=51 // pred_region
          %414 = dma.done [#allocation7], 1024
        $region60: #{tpu_custom_call.1} parent=51 // pred_fallthru
          _
        // Predicated region
        $region61: #{tpu_custom_call.1} parent=51 // pred_check
          %p415 = pneg %p111
        $region62: #{tpu_custom_call.1} parent=51 // pred_check_branch
          %417 = sbr.rel (%p415) target = $region64
        $region63: #{tpu_custom_call.1} parent=51 // pred_region
          %418 = dma.done [#allocation7], 16
        $region64: #{tpu_custom_call.1} parent=51 // pred_fallthru
          _
        // Predicated region
        $region65: #{tpu_custom_call.1} parent=51 // pred_check
          %p419 = pneg %p132
        $region66: #{tpu_custom_call.1} parent=51 // pred_check_branch
          %421 = sbr.rel (%p419) target = $region68
        $region67: #{tpu_custom_call.1} parent=51 // pred_region
          %422 = dma.done [#allocation10], 1024
        $region68: #{tpu_custom_call.1} parent=51 // pred_fallthru
          _
        // Predicated region
        $region69: #{tpu_custom_call.1} parent=51 // pred_check
          %p423 = pneg %p153
        $region70: #{tpu_custom_call.1} parent=51 // pred_check_branch
          %425 = sbr.rel (%p423) target = $region72
        $region71: #{tpu_custom_call.1} parent=51 // pred_region
          %426 = dma.done [#allocation10], 16
        $region72: #{tpu_custom_call.1} parent=51 // pred_fallthru
          _
        // Predicated region
        $region73: #{tpu_custom_call.1} parent=51 // pred_check
          %p427 = pneg %p174
        $region74: #{tpu_custom_call.1} parent=51 // pred_check_branch
          %429 = sbr.rel (%p427) target = $region76
        $region75: #{tpu_custom_call.1} parent=51 // pred_region
          %430 = dma.done [#allocation13], 2176
        $region76: #{tpu_custom_call.1} parent=51 // pred_fallthru
          _
        // Predicated region
        $region77: #{tpu_custom_call.1} parent=51 // pred_check
          %p431 = pneg %p195
        $region78: #{tpu_custom_call.1} parent=51 // pred_check_branch
          %433 = sbr.rel (%p431) target = $region80
        $region79: #{tpu_custom_call.1} parent=51 // pred_region
          %434 = dma.done [#allocation13], 2048
        $region80: #{tpu_custom_call.1} parent=51 // pred_fallthru
          _
        // Predicated region
        $region81: #{tpu_custom_call.1} parent=51 // pred_check
          %p435 = pneg %p216
        $region82: #{tpu_custom_call.1} parent=51 // pred_check_branch
          %437 = sbr.rel (%p435) target = $region84
        $region83: #{tpu_custom_call.1} parent=51 // pred_region
          %438 = dma.done [#allocation16], 16
        $region84: #{tpu_custom_call.1} parent=51 // pred_fallthru
          _
        %s439 = sand.u32 %s56, 1
        %s440 = scalar_lea.sflag [#allocation4], %s439
        %s441 = sand.u32 %s56, 1
        %s442 = smul.addr %s441, 128
        %s443 = scalar_lea.vmem [#allocation3], %s442
        %p444 = pneg %p69
        %p445 = pneg %p66
        %p446 = pneg %p90
        %p447 = pneg %p87
        %p448 = pneg %p111
        %p449 = pneg %p108
        %p450 = pneg %p132
        %p451 = pneg %p129
        %p452 = pneg %p153
        %p453 = pneg %p150
        %p454 = pneg %p174
        %p455 = pneg %p171
        %p456 = pneg %p195
        %p457 = pneg %p192
        %p458 = pneg %p216
        %p459 = pneg %p213
        %p460 = pneg %p242
        %p461 = pneg %p239
        %s462 = sand.u32 %s229, 1
        %s463 = scalar_lea.sflag [#allocation5], %s462
        %s464 = sand.u32 %s229, 1
        %s465 = smul.addr %s464, 64
        %s466 = scalar_lea.vmem [#allocation17], %s465
        %p467 = pneg %p268
        %p468 = pneg %p265
        %s469 = sand.u32 %s255, 1
        %s470 = scalar_lea.sflag [#allocation19], %s469
        %s471 = sand.u32 %s255, 1
        %s472 = scalar_lea.vmem [#allocation18], %s471
        %s473 = smul.u32 32, %s39
        %p475 = scmp.eq.s32.totalorder %s39, 0
        // Predicated region
        $region85: #{tpu_custom_call.1} parent=51 // pred_check
          %p476 = pneg %p475
        $region86: #{tpu_custom_call.1} parent=51 // pred_check_branch
          %478 = sbr.rel (%p476) target = $region88
        $region87: #{tpu_custom_call.1} parent=51 // pred_region
          %479 = vst [vmem:[#allocation2] sm:$0xff] 0.0
          %480 = vst [vmem:[#allocation2 + $0x8] sm:$0xff] 0.0
          %481 = vst [vmem:[#allocation2 + $0x10] sm:$0xff] 0.0
          %482 = vst [vmem:[#allocation2 + $0x18] sm:$0xff] 0.0
          %483 = vst [vmem:[#allocation2 + $0x20] sm:$0xff] 0.0
          %484 = vst [vmem:[#allocation2 + $0x28] sm:$0xff] 0.0
          %485 = vst [vmem:[#allocation2 + $0x30] sm:$0xff] 0.0
          %486 = vst [vmem:[#allocation2 + $0x38] sm:$0xff] 0.0
          %487 = vst [vmem:[#allocation2 + $0x40] sm:$0xff] 0.0
          %488 = vst [vmem:[#allocation2 + $0x48] sm:$0xff] 0.0
          %489 = vst [vmem:[#allocation2 + $0x50] sm:$0xff] 0.0
          %490 = vst [vmem:[#allocation2 + $0x58] sm:$0xff] 0.0
          %491 = vst [vmem:[#allocation2 + $0x60] sm:$0xff] 0.0
          %492 = vst [vmem:[#allocation2 + $0x68] sm:$0xff] 0.0
          %493 = vst [vmem:[#allocation2 + $0x70] sm:$0xff] 0.0
          %494 = vst [vmem:[#allocation2 + $0x78] sm:$0xff] 0.0
        $region88: #{tpu_custom_call.1} parent=51 // pred_fallthru
          _
        %v495 = vld [vmem:[%s406] sm:$0xf]
        %v496 = vld [vmem:[%s406 + $0x4] sm:$0xf]
        %v497 = vld [vmem:[%s406 + $0x8] sm:$0xf]
        %v498 = vld [vmem:[%s406 + $0xc] sm:$0xf]
        %v499 = vld [vmem:[%s406 + $0x10] sm:$0xf]
        %v500 = vld [vmem:[%s406 + $0x14] sm:$0xf]
        %v501 = vld [vmem:[%s406 + $0x18] sm:$0xf]
        %v502 = vld [vmem:[%s406 + $0x1c] sm:$0xf]
        %v503 = vld [vmem:[%s406 + $0x20] sm:$0xf]
        %v504 = vld [vmem:[%s406 + $0x24] sm:$0xf]
        %v505 = vld [vmem:[%s406 + $0x28] sm:$0xf]
        %v506 = vld [vmem:[%s406 + $0x2c] sm:$0xf]
        %v507 = vld [vmem:[%s406 + $0x30] sm:$0xf]
        %v508 = vld [vmem:[%s406 + $0x34] sm:$0xf]
        %v509 = vld [vmem:[%s406 + $0x38] sm:$0xf]
        %v510 = vld [vmem:[%s406 + $0x3c] sm:$0xf]
        %v511 = vld [vmem:[%s406 + $0x40] sm:$0xf]
        %v512 = vld [vmem:[%s406 + $0x44] sm:$0xf]
        %v513 = vld [vmem:[%s406 + $0x48] sm:$0xf]
        %v514 = vld [vmem:[%s406 + $0x4c] sm:$0xf]
        %v515 = vld [vmem:[%s406 + $0x50] sm:$0xf]
        %v516 = vld [vmem:[%s406 + $0x54] sm:$0xf]
        %v517 = vld [vmem:[%s406 + $0x58] sm:$0xf]
        %v518 = vld [vmem:[%s406 + $0x5c] sm:$0xf]
        %v519 = vld [vmem:[%s406 + $0x60] sm:$0xf]
        %v520 = vld [vmem:[%s406 + $0x64] sm:$0xf]
        %v521 = vld [vmem:[%s406 + $0x68] sm:$0xf]
        %v522 = vld [vmem:[%s406 + $0x6c] sm:$0xf]
        %v523 = vld [vmem:[%s406 + $0x70] sm:$0xf]
        %v524 = vld [vmem:[%s406 + $0x74] sm:$0xf]
        %v525 = vld [vmem:[%s406 + $0x78] sm:$0xf]
        %v526 = vld [vmem:[%s406 + $0x7c] sm:$0xf]
        %v527 = vld [vmem:[#allocation6] sm:$0xf]
        %v528 = vld [vmem:[#allocation6 + $0x4] sm:$0xf]
        %v529 = vld [vmem:[#allocation6 + $0x8] sm:$0xf]
        %v530 = vld [vmem:[#allocation6 + $0xc] sm:$0xf]
        %v531 = vld [vmem:[#allocation6 + $0x10] sm:$0xf]
        %v532 = vld [vmem:[#allocation6 + $0x14] sm:$0xf]
        %v533 = vld [vmem:[#allocation6 + $0x18] sm:$0xf]
        %v534 = vld [vmem:[#allocation6 + $0x1c] sm:$0xf]
        %v535 = vld [vmem:[#allocation6 + $0x20] sm:$0xf]
        %v536 = vld [vmem:[#allocation6 + $0x24] sm:$0xf]
        %v537 = vld [vmem:[#allocation6 + $0x28] sm:$0xf]
        %v538 = vld [vmem:[#allocation6 + $0x2c] sm:$0xf]
        %v539 = vld [vmem:[#allocation6 + $0x30] sm:$0xf]
        %v540 = vld [vmem:[#allocation6 + $0x34] sm:$0xf]
        %v541 = vld [vmem:[#allocation6 + $0x38] sm:$0xf]
        %v542 = vld [vmem:[#allocation6 + $0x3c] sm:$0xf]
        %v543 = vld [vmem:[#allocation8] sm:$0x1]
        %v545 = vlaneseq
        %v546 = vshrl.u32 %v545, 7
        %v547 = vsub.s32 0, %v546
        %v548 = vrot.slane %v543, %v547
        %v582 = vunpack.c.l.b16 %v495
        %v583 = vunpack.c.l.b16 %v496
        %v584 = vunpack.c.l.b16 %v497
        %v585 = vunpack.c.l.b16 %v498
        %v586 = vunpack.c.l.b16 %v499
        %v587 = vunpack.c.l.b16 %v500
        %v588 = vunpack.c.l.b16 %v501
        %v589 = vunpack.c.l.b16 %v502
        %v590 = vunpack.c.l.b16 %v503
        %v591 = vunpack.c.l.b16 %v504
        %v592 = vunpack.c.l.b16 %v505
        %v593 = vunpack.c.l.b16 %v506
        %v594 = vunpack.c.l.b16 %v507
        %v595 = vunpack.c.l.b16 %v508
        %v596 = vunpack.c.l.b16 %v509
        %v597 = vunpack.c.l.b16 %v510
        %v598 = vunpack.c.l.b16 %v511
        %v599 = vunpack.c.l.b16 %v512
        %v600 = vunpack.c.l.b16 %v513
        %v601 = vunpack.c.l.b16 %v514
        %v602 = vunpack.c.l.b16 %v515
        %v603 = vunpack.c.l.b16 %v516
        %v604 = vunpack.c.l.b16 %v517
        %v605 = vunpack.c.l.b16 %v518
        %v606 = vunpack.c.l.b16 %v519
        %v607 = vunpack.c.l.b16 %v520
        %v608 = vunpack.c.l.b16 %v521
        %v609 = vunpack.c.l.b16 %v522
        %v610 = vunpack.c.l.b16 %v523
        %v611 = vunpack.c.l.b16 %v524
        %v612 = vunpack.c.l.b16 %v525
        %v613 = vunpack.c.l.b16 %v526
        %v614 = vpack.c.b16 %v583, %v582
        %v615 = vpack.c.b16 %v585, %v584
        %v616 = vpack.c.b16 %v587, %v586
        %v617 = vpack.c.b16 %v589, %v588
        %v618 = vpack.c.b16 %v591, %v590
        %v619 = vpack.c.b16 %v593, %v592
        %v620 = vpack.c.b16 %v595, %v594
        %v621 = vpack.c.b16 %v597, %v596
        %v622 = vpack.c.b16 %v599, %v598
        %v623 = vpack.c.b16 %v601, %v600
        %v624 = vpack.c.b16 %v603, %v602
        %v625 = vpack.c.b16 %v605, %v604
        %v626 = vpack.c.b16 %v607, %v606
        %v627 = vpack.c.b16 %v609, %v608
        %v628 = vpack.c.b16 %v611, %v610
        %v629 = vpack.c.b16 %v613, %v612
        %v662 = vunpack.c.l.b16 %v527
        %v663 = vunpack.c.l.b16 %v528
        %v664 = vunpack.c.l.b16 %v529
        %v665 = vunpack.c.l.b16 %v530
        %v666 = vunpack.c.l.b16 %v531
        %v667 = vunpack.c.l.b16 %v532
        %v668 = vunpack.c.l.b16 %v533
        %v669 = vunpack.c.l.b16 %v534
        %v670 = vunpack.c.l.b16 %v535
        %v671 = vunpack.c.l.b16 %v536
        %v672 = vunpack.c.l.b16 %v537
        %v673 = vunpack.c.l.b16 %v538
        %v674 = vunpack.c.l.b16 %v539
        %v675 = vunpack.c.l.b16 %v540
        %v676 = vunpack.c.l.b16 %v541
        %v677 = vunpack.c.l.b16 %v542
        %v678 = vpack.c.b16 %v663, %v662
        %v679 = vpack.c.b16 %v665, %v664
        %v680 = vpack.c.b16 %v667, %v666
        %v681 = vpack.c.b16 %v669, %v668
        %v682 = vpack.c.b16 %v671, %v670
        %v683 = vpack.c.b16 %v673, %v672
        %v684 = vpack.c.b16 %v675, %v674
        %v685 = vpack.c.b16 %v677, %v676
        %694 = vmatprep.subr.bf16.mxu0 0
        %695 = vmatpush1.bf16.msra.mxu0 %v678
        %696 = vmatprep.subr.bf16.mxu0 0
        %697 = vmatpush1.bf16.msra.mxu0 %v679
        %698 = vmatprep.subr.bf16.mxu0 0
        %699 = vmatpush1.bf16.msra.mxu0 %v680
        %700 = vmatprep.subr.bf16.mxu0 0
        %701 = vmatpush1.bf16.msra.mxu0 %v681
        %702 = vmatprep.subr.bf16.mxu0 0
        %703 = vmatpush1.bf16.msra.mxu0 %v682
        %704 = vmatprep.subr.bf16.mxu0 0
        %705 = vmatpush1.bf16.msra.mxu0 %v683
        %706 = vmatprep.subr.bf16.mxu0 0
        %707 = vmatpush1.bf16.msra.mxu0 %v684
        %708 = vmatprep.subr.bf16.mxu0 0
        %709 = vmatpush1.bf16.msra.mxu0 %v685
        %710 = vmatprep.subr.bf16.mxu0 0
        %711 = vmatpush1.bf16.msra.mxu0 0
        %712 = vmatprep.subr.bf16.mxu0 0
        %713 = vmatpush1.bf16.msra.mxu0 0
        %714 = vmatprep.subr.bf16.mxu0 0
        %715 = vmatpush1.bf16.msra.mxu0 0
        %716 = vmatprep.subr.bf16.mxu0 0
        %717 = vmatpush1.bf16.msra.mxu0 0
        %718 = vmatprep.subr.bf16.mxu0 0
        %719 = vmatpush1.bf16.msra.mxu0 0
        %720 = vmatprep.subr.bf16.mxu0 0
        %721 = vmatpush1.bf16.msra.mxu0 0
        %722 = vmatprep.subr.bf16.mxu0 0
        %723 = vmatpush1.bf16.msra.mxu0 0
        %724 = vmatprep.subr.bf16.mxu0 0
        %725 = vmatpush1.bf16.msra.mxu0 0
        %726 = vmatprep.mubr.bf16.mxu0 0
        %727 = vmatmul.mubr.bf16.gmra.mrb[0].mxu0 %v614
        %v728 = vpop.f32.mrb[0].mxu0
        %v729 = vadd.f32 %v548, %v728
        %v730 = vpop.f32.mrb[0].mxu0
        %v731 = vpop.f32.mrb[0].mxu0
        %v732 = vadd.f32 %v548, %v731
        %v733 = vpop.f32.mrb[0].mxu0
        %734 = vmatprep.mubr.bf16.mxu0 0
        %735 = vmatmul.mubr.bf16.gmra.mrb[0].mxu0 %v615
        %v736 = vpop.f32.mrb[0].mxu0
        %v737 = vadd.f32 %v548, %v736
        %v738 = vpop.f32.mrb[0].mxu0
        %v739 = vpop.f32.mrb[0].mxu0
        %v740 = vadd.f32 %v548, %v739
        %v741 = vpop.f32.mrb[0].mxu0
        %742 = vmatprep.mubr.bf16.mxu0 0
        %743 = vmatmul.mubr.bf16.gmra.mrb[0].mxu0 %v616
        %v744 = vpop.f32.mrb[0].mxu0
        %v745 = vadd.f32 %v548, %v744
        %v746 = vpop.f32.mrb[0].mxu0
        %v747 = vpop.f32.mrb[0].mxu0
        %v748 = vadd.f32 %v548, %v747
        %v749 = vpop.f32.mrb[0].mxu0
        %750 = vmatprep.mubr.bf16.mxu0 0
        %751 = vmatmul.mubr.bf16.gmra.mrb[0].mxu0 %v617
        %v752 = vpop.f32.mrb[0].mxu0
        %v753 = vadd.f32 %v548, %v752
        %v754 = vpop.f32.mrb[0].mxu0
        %v755 = vpop.f32.mrb[0].mxu0
        %v756 = vadd.f32 %v548, %v755
        %v757 = vpop.f32.mrb[0].mxu0
        %758 = vmatprep.mubr.bf16.mxu0 0
        %759 = vmatmul.mubr.bf16.gmra.mrb[0].mxu0 %v618
        %v760 = vpop.f32.mrb[0].mxu0
        %v761 = vadd.f32 %v548, %v760
        %v762 = vpop.f32.mrb[0].mxu0
        %v763 = vpop.f32.mrb[0].mxu0
        %v764 = vadd.f32 %v548, %v763
        %v765 = vpop.f32.mrb[0].mxu0
        %766 = vmatprep.mubr.bf16.mxu0 0
        %767 = vmatmul.mubr.bf16.gmra.mrb[0].mxu0 %v619
        %v768 = vpop.f32.mrb[0].mxu0
        %v769 = vadd.f32 %v548, %v768
        %v770 = vpop.f32.mrb[0].mxu0
        %v771 = vpop.f32.mrb[0].mxu0
        %v772 = vadd.f32 %v548, %v771
        %v773 = vpop.f32.mrb[0].mxu0
        %774 = vmatprep.mubr.bf16.mxu0 0
        %775 = vmatmul.mubr.bf16.gmra.mrb[0].mxu0 %v620
        %v776 = vpop.f32.mrb[0].mxu0
        %v777 = vadd.f32 %v548, %v776
        %v778 = vpop.f32.mrb[0].mxu0
        %v779 = vpop.f32.mrb[0].mxu0
        %v780 = vadd.f32 %v548, %v779
        %v781 = vpop.f32.mrb[0].mxu0
        %782 = vmatprep.mubr.bf16.mxu0 0
        %783 = vmatmul.mubr.bf16.gmra.mrb[0].mxu0 %v621
        %v784 = vpop.f32.mrb[0].mxu0
        %v785 = vadd.f32 %v548, %v784
        %v786 = vpop.f32.mrb[0].mxu0
        %v787 = vpop.f32.mrb[0].mxu0
        %v788 = vadd.f32 %v548, %v787
        %v789 = vpop.f32.mrb[0].mxu0
        %790 = vmatprep.mubr.bf16.mxu0 0
        %791 = vmatmul.mubr.bf16.gmra.mrb[0].mxu0 %v622
        %v792 = vpop.f32.mrb[0].mxu0
        %v793 = vadd.f32 %v548, %v792
        %v794 = vpop.f32.mrb[0].mxu0
        %v795 = vpop.f32.mrb[0].mxu0
        %v796 = vadd.f32 %v548, %v795
        %v797 = vpop.f32.mrb[0].mxu0
        %798 = vmatprep.mubr.bf16.mxu0 0
        %799 = vmatmul.mubr.bf16.gmra.mrb[0].mxu0 %v623
        %v800 = vpop.f32.mrb[0].mxu0
        %v801 = vadd.f32 %v548, %v800
        %v802 = vpop.f32.mrb[0].mxu0
        %v803 = vpop.f32.mrb[0].mxu0
        %v804 = vadd.f32 %v548, %v803
        %v805 = vpop.f32.mrb[0].mxu0
        %806 = vmatprep.mubr.bf16.mxu0 0
        %807 = vmatmul.mubr.bf16.gmra.mrb[0].mxu0 %v624
        %v808 = vpop.f32.mrb[0].mxu0
        %v809 = vadd.f32 %v548, %v808
        %v810 = vpop.f32.mrb[0].mxu0
        %v811 = vpop.f32.mrb[0].mxu0
        %v812 = vadd.f32 %v548, %v811
        %v813 = vpop.f32.mrb[0].mxu0
        %814 = vmatprep.mubr.bf16.mxu0 0
        %815 = vmatmul.mubr.bf16.gmra.mrb[0].mxu0 %v625
        %v816 = vpop.f32.mrb[0].mxu0
        %v817 = vadd.f32 %v548, %v816
        %v818 = vpop.f32.mrb[0].mxu0
        %v819 = vpop.f32.mrb[0].mxu0
        %v820 = vadd.f32 %v548, %v819
        %v821 = vpop.f32.mrb[0].mxu0
        %822 = vmatprep.mubr.bf16.mxu0 0
        %823 = vmatmul.mubr.bf16.gmra.mrb[0].mxu0 %v626
        %v824 = vpop.f32.mrb[0].mxu0
        %v825 = vadd.f32 %v548, %v824
        %v826 = vpop.f32.mrb[0].mxu0
        %v827 = vpop.f32.mrb[0].mxu0
        %v828 = vadd.f32 %v548, %v827
        %v829 = vpop.f32.mrb[0].mxu0
        %830 = vmatprep.mubr.bf16.mxu0 0
        %831 = vmatmul.mubr.bf16.gmra.mrb[0].mxu0 %v627
        %v832 = vpop.f32.mrb[0].mxu0
        %v833 = vadd.f32 %v548, %v832
        %v834 = vpop.f32.mrb[0].mxu0
        %v835 = vpop.f32.mrb[0].mxu0
        %v836 = vadd.f32 %v548, %v835
        %v837 = vpop.f32.mrb[0].mxu0
        %838 = vmatprep.mubr.bf16.mxu0 0
        %839 = vmatmul.mubr.bf16.gmra.mrb[0].mxu0 %v628
        %v840 = vpop.f32.mrb[0].mxu0
        %v841 = vadd.f32 %v548, %v840
        %v842 = vpop.f32.mrb[0].mxu0
        %v843 = vpop.f32.mrb[0].mxu0
        %v844 = vadd.f32 %v548, %v843
        %v845 = vpop.f32.mrb[0].mxu0
        %846 = vmatprep.mubr.bf16.mxu0 0
        %847 = vmatmul.mubr.bf16.gmra.mrb[0].mxu0 %v629
        %v848 = vpop.f32.mrb[0].mxu0
        %v849 = vadd.f32 %v548, %v848
        %v850 = vpop.f32.mrb[0].mxu0
        %v851 = vpop.f32.mrb[0].mxu0
        %v852 = vadd.f32 %v548, %v851
        %v853 = vpop.f32.mrb[0].mxu0
        %854 = vdwg.mxu0
        %v855 = vld [vmem:[#allocation9] sm:$0xf]
        %v856 = vld [vmem:[#allocation9 + $0x4] sm:$0xf]
        %v857 = vld [vmem:[#allocation9 + $0x8] sm:$0xf]
        %v858 = vld [vmem:[#allocation9 + $0xc] sm:$0xf]
        %v859 = vld [vmem:[#allocation9 + $0x10] sm:$0xf]
        %v860 = vld [vmem:[#allocation9 + $0x14] sm:$0xf]
        %v861 = vld [vmem:[#allocation9 + $0x18] sm:$0xf]
        %v862 = vld [vmem:[#allocation9 + $0x1c] sm:$0xf]
        %v863 = vld [vmem:[#allocation9 + $0x20] sm:$0xf]
        %v864 = vld [vmem:[#allocation9 + $0x24] sm:$0xf]
        %v865 = vld [vmem:[#allocation9 + $0x28] sm:$0xf]
        %v866 = vld [vmem:[#allocation9 + $0x2c] sm:$0xf]
        %v867 = vld [vmem:[#allocation9 + $0x30] sm:$0xf]
        %v868 = vld [vmem:[#allocation9 + $0x34] sm:$0xf]
        %v869 = vld [vmem:[#allocation9 + $0x38] sm:$0xf]
        %v870 = vld [vmem:[#allocation9 + $0x3c] sm:$0xf]
        %v871 = vld [vmem:[#allocation11] sm:$0x1]
        %v873 = vlaneseq
        %v874 = vshrl.u32 %v873, 7
        %v875 = vsub.s32 0, %v874
        %v876 = vrot.slane %v871, %v875
        %v894 = vunpack.c.l.b16 %v855
        %v895 = vunpack.c.l.b16 %v856
        %v896 = vunpack.c.l.b16 %v857
        %v897 = vunpack.c.l.b16 %v858
        %v898 = vunpack.c.l.b16 %v859
        %v899 = vunpack.c.l.b16 %v860
        %v900 = vunpack.c.l.b16 %v861
        %v901 = vunpack.c.l.b16 %v862
        %v902 = vunpack.c.l.b16 %v863
        %v903 = vunpack.c.l.b16 %v864
        %v904 = vunpack.c.l.b16 %v865
        %v905 = vunpack.c.l.b16 %v866
        %v906 = vunpack.c.l.b16 %v867
        %v907 = vunpack.c.l.b16 %v868
        %v908 = vunpack.c.l.b16 %v869
        %v909 = vunpack.c.l.b16 %v870
        %v910 = vpack.c.b16 %v895, %v894
        %v911 = vpack.c.b16 %v897, %v896
        %v912 = vpack.c.b16 %v899, %v898
        %v913 = vpack.c.b16 %v901, %v900
        %v914 = vpack.c.b16 %v903, %v902
        %v915 = vpack.c.b16 %v905, %v904
        %v916 = vpack.c.b16 %v907, %v906
        %v917 = vpack.c.b16 %v909, %v908
        %926 = vmatprep.subr.bf16.mxu0 0
        %927 = vmatpush1.bf16.msra.mxu0 %v910
        %928 = vmatprep.subr.bf16.mxu0 0
        %929 = vmatpush1.bf16.msra.mxu0 %v911
        %930 = vmatprep.subr.bf16.mxu0 0
        %931 = vmatpush1.bf16.msra.mxu0 %v912
        %932 = vmatprep.subr.bf16.mxu0 0
        %933 = vmatpush1.bf16.msra.mxu0 %v913
        %934 = vmatprep.subr.bf16.mxu0 0
        %935 = vmatpush1.bf16.msra.mxu0 %v914
        %936 = vmatprep.subr.bf16.mxu0 0
        %937 = vmatpush1.bf16.msra.mxu0 %v915
        %938 = vmatprep.subr.bf16.mxu0 0
        %939 = vmatpush1.bf16.msra.mxu0 %v916
        %940 = vmatprep.subr.bf16.mxu0 0
        %941 = vmatpush1.bf16.msra.mxu0 %v917
        %942 = vmatprep.subr.bf16.mxu0 0
        %943 = vmatpush1.bf16.msra.mxu0 0
        %944 = vmatprep.subr.bf16.mxu0 0
        %945 = vmatpush1.bf16.msra.mxu0 0
        %946 = vmatprep.subr.bf16.mxu0 0
        %947 = vmatpush1.bf16.msra.mxu0 0
        %948 = vmatprep.subr.bf16.mxu0 0
        %949 = vmatpush1.bf16.msra.mxu0 0
        %950 = vmatprep.subr.bf16.mxu0 0
        %951 = vmatpush1.bf16.msra.mxu0 0
        %952 = vmatprep.subr.bf16.mxu0 0
        %953 = vmatpush1.bf16.msra.mxu0 0
        %954 = vmatprep.subr.bf16.mxu0 0
        %955 = vmatpush1.bf16.msra.mxu0 0
        %956 = vmatprep.subr.bf16.mxu0 0
        %957 = vmatpush1.bf16.msra.mxu0 0
        %958 = vmatprep.mubr.bf16.mxu0 0
        %959 = vmatmul.mubr.bf16.gmra.mrb[0].mxu0 %v614
        %v960 = vpop.f32.mrb[0].mxu0
        %v961 = vadd.f32 %v876, %v960
        %v962 = vpop.f32.mrb[0].mxu0
        %v963 = vpop.f32.mrb[0].mxu0
        %v964 = vadd.f32 %v876, %v963
        %v965 = vpop.f32.mrb[0].mxu0
        %966 = vmatprep.mubr.bf16.mxu0 0
        %967 = vmatmul.mubr.bf16.gmra.mrb[0].mxu0 %v615
        %v968 = vpop.f32.mrb[0].mxu0
        %v969 = vadd.f32 %v876, %v968
        %v970 = vpop.f32.mrb[0].mxu0
        %v971 = vpop.f32.mrb[0].mxu0
        %v972 = vadd.f32 %v876, %v971
        %v973 = vpop.f32.mrb[0].mxu0
        %974 = vmatprep.mubr.bf16.mxu0 0
        %975 = vmatmul.mubr.bf16.gmra.mrb[0].mxu0 %v616
        %v976 = vpop.f32.mrb[0].mxu0
        %v977 = vadd.f32 %v876, %v976
        %v978 = vpop.f32.mrb[0].mxu0
        %v979 = vpop.f32.mrb[0].mxu0
        %v980 = vadd.f32 %v876, %v979
        %v981 = vpop.f32.mrb[0].mxu0
        %982 = vmatprep.mubr.bf16.mxu0 0
        %983 = vmatmul.mubr.bf16.gmra.mrb[0].mxu0 %v617
        %v984 = vpop.f32.mrb[0].mxu0
        %v985 = vadd.f32 %v876, %v984
        %v986 = vpop.f32.mrb[0].mxu0
        %v987 = vpop.f32.mrb[0].mxu0
        %v988 = vadd.f32 %v876, %v987
        %v989 = vpop.f32.mrb[0].mxu0
        %990 = vmatprep.mubr.bf16.mxu0 0
        %991 = vmatmul.mubr.bf16.gmra.mrb[0].mxu0 %v618
        %v992 = vpop.f32.mrb[0].mxu0
        %v993 = vadd.f32 %v876, %v992
        %v994 = vpop.f32.mrb[0].mxu0
        %v995 = vpop.f32.mrb[0].mxu0
        %v996 = vadd.f32 %v876, %v995
        %v997 = vpop.f32.mrb[0].mxu0
        %998 = vmatprep.mubr.bf16.mxu0 0
        %999 = vmatmul.mubr.bf16.gmra.mrb[0].mxu0 %v619
        %v1000 = vpop.f32.mrb[0].mxu0
        %v1001 = vadd.f32 %v876, %v1000
        %v1002 = vpop.f32.mrb[0].mxu0
        %v1003 = vpop.f32.mrb[0].mxu0
        %v1004 = vadd.f32 %v876, %v1003
        %v1005 = vpop.f32.mrb[0].mxu0
        %1006 = vmatprep.mubr.bf16.mxu0 0
        %1007 = vmatmul.mubr.bf16.gmra.mrb[0].mxu0 %v620
        %v1008 = vpop.f32.mrb[0].mxu0
        %v1009 = vadd.f32 %v876, %v1008
        %v1010 = vpop.f32.mrb[0].mxu0
        %v1011 = vpop.f32.mrb[0].mxu0
        %v1012 = vadd.f32 %v876, %v1011
        %v1013 = vpop.f32.mrb[0].mxu0
        %1014 = vmatprep.mubr.bf16.mxu0 0
        %1015 = vmatmul.mubr.bf16.gmra.mrb[0].mxu0 %v621
        %v1016 = vpop.f32.mrb[0].mxu0
        %v1017 = vadd.f32 %v876, %v1016
        %v1018 = vpop.f32.mrb[0].mxu0
        %v1019 = vpop.f32.mrb[0].mxu0
        %v1020 = vadd.f32 %v876, %v1019
        %v1021 = vpop.f32.mrb[0].mxu0
        %1022 = vmatprep.mubr.bf16.mxu0 0
        %1023 = vmatmul.mubr.bf16.gmra.mrb[0].mxu0 %v622
        %v1024 = vpop.f32.mrb[0].mxu0
        %v1025 = vadd.f32 %v876, %v1024
        %v1026 = vpop.f32.mrb[0].mxu0
        %v1027 = vpop.f32.mrb[0].mxu0
        %v1028 = vadd.f32 %v876, %v1027
        %v1029 = vpop.f32.mrb[0].mxu0
        %1030 = vmatprep.mubr.bf16.mxu0 0
        %1031 = vmatmul.mubr.bf16.gmra.mrb[0].mxu0 %v623
        %v1032 = vpop.f32.mrb[0].mxu0
        %v1033 = vadd.f32 %v876, %v1032
        %v1034 = vpop.f32.mrb[0].mxu0
        %v1035 = vpop.f32.mrb[0].mxu0
        %v1036 = vadd.f32 %v876, %v1035
        %v1037 = vpop.f32.mrb[0].mxu0
        %1038 = vmatprep.mubr.bf16.mxu0 0
        %1039 = vmatmul.mubr.bf16.gmra.mrb[0].mxu0 %v624
        %v1040 = vpop.f32.mrb[0].mxu0
        %v1041 = vadd.f32 %v876, %v1040
        %v1042 = vpop.f32.mrb[0].mxu0
        %v1043 = vpop.f32.mrb[0].mxu0
        %v1044 = vadd.f32 %v876, %v1043
        %v1045 = vpop.f32.mrb[0].mxu0
        %1046 = vmatprep.mubr.bf16.mxu0 0
        %1047 = vmatmul.mubr.bf16.gmra.mrb[0].mxu0 %v625
        %v1048 = vpop.f32.mrb[0].mxu0
        %v1049 = vadd.f32 %v876, %v1048
        %v1050 = vpop.f32.mrb[0].mxu0
        %v1051 = vpop.f32.mrb[0].mxu0
        %v1052 = vadd.f32 %v876, %v1051
        %v1053 = vpop.f32.mrb[0].mxu0
        %1054 = vmatprep.mubr.bf16.mxu0 0
        %1055 = vmatmul.mubr.bf16.gmra.mrb[0].mxu0 %v626
        %v1056 = vpop.f32.mrb[0].mxu0
        %v1057 = vadd.f32 %v876, %v1056
        %v1058 = vpop.f32.mrb[0].mxu0
        %v1059 = vpop.f32.mrb[0].mxu0
        %v1060 = vadd.f32 %v876, %v1059
        %v1061 = vpop.f32.mrb[0].mxu0
        %1062 = vmatprep.mubr.bf16.mxu0 0
        %1063 = vmatmul.mubr.bf16.gmra.mrb[0].mxu0 %v627
        %v1064 = vpop.f32.mrb[0].mxu0
        %v1065 = vadd.f32 %v876, %v1064
        %v1066 = vpop.f32.mrb[0].mxu0
        %v1067 = vpop.f32.mrb[0].mxu0
        %v1068 = vadd.f32 %v876, %v1067
        %v1069 = vpop.f32.mrb[0].mxu0
        %1070 = vmatprep.mubr.bf16.mxu0 0
        %1071 = vmatmul.mubr.bf16.gmra.mrb[0].mxu0 %v628
        %v1072 = vpop.f32.mrb[0].mxu0
        %v1073 = vadd.f32 %v876, %v1072
        %v1074 = vpop.f32.mrb[0].mxu0
        %v1075 = vpop.f32.mrb[0].mxu0
        %v1076 = vadd.f32 %v876, %v1075
        %v1077 = vpop.f32.mrb[0].mxu0
        %1078 = vmatprep.mubr.bf16.mxu0 0
        %1079 = vmatmul.mubr.bf16.gmra.mrb[0].mxu0 %v629
        %v1080 = vpop.f32.mrb[0].mxu0
        %v1081 = vadd.f32 %v876, %v1080
        %v1082 = vpop.f32.mrb[0].mxu0
        %v1083 = vpop.f32.mrb[0].mxu0
        %v1084 = vadd.f32 %v876, %v1083
        %v1085 = vpop.f32.mrb[0].mxu0
        %1086 = vdwg.mxu0
        %v1087 = vld [vmem:[#allocation2] sm:$0xff]
        %v1088 = vld [vmem:[#allocation2 + $0x8] sm:$0xff]
        %v1089 = vld [vmem:[#allocation2 + $0x10] sm:$0xff]
        %v1090 = vld [vmem:[#allocation2 + $0x18] sm:$0xff]
        %v1091 = vld [vmem:[#allocation2 + $0x20] sm:$0xff]
        %v1092 = vld [vmem:[#allocation2 + $0x28] sm:$0xff]
        %v1093 = vld [vmem:[#allocation2 + $0x30] sm:$0xff]
        %v1094 = vld [vmem:[#allocation2 + $0x38] sm:$0xff]
        %v1095 = vld [vmem:[#allocation2 + $0x40] sm:$0xff]
        %v1096 = vld [vmem:[#allocation2 + $0x48] sm:$0xff]
        %v1097 = vld [vmem:[#allocation2 + $0x50] sm:$0xff]
        %v1098 = vld [vmem:[#allocation2 + $0x58] sm:$0xff]
        %v1099 = vld [vmem:[#allocation2 + $0x60] sm:$0xff]
        %v1100 = vld [vmem:[#allocation2 + $0x68] sm:$0xff]
        %v1101 = vld [vmem:[#allocation2 + $0x70] sm:$0xff]
        %v1102 = vld [vmem:[#allocation2 + $0x78] sm:$0xff]
        %v1103 = vpack.c.bf16 %v732, %v729
        %v1104 = vpack.c.bf16 %v740, %v737
        %v1105 = vpack.c.bf16 %v748, %v745
        %v1106 = vpack.c.bf16 %v756, %v753
        %v1107 = vpack.c.bf16 %v764, %v761
        %v1108 = vpack.c.bf16 %v772, %v769
        %v1109 = vpack.c.bf16 %v780, %v777
        %v1110 = vpack.c.bf16 %v788, %v785
        %v1111 = vpack.c.bf16 %v796, %v793
        %v1112 = vpack.c.bf16 %v804, %v801
        %v1113 = vpack.c.bf16 %v812, %v809
        %v1114 = vpack.c.bf16 %v820, %v817
        %v1115 = vpack.c.bf16 %v828, %v825
        %v1116 = vpack.c.bf16 %v836, %v833
        %v1117 = vpack.c.bf16 %v844, %v841
        %v1118 = vpack.c.bf16 %v852, %v849
        %v1119 = vpack.c.bf16 %v964, %v961
        %v1120 = vpack.c.bf16 %v972, %v969
        %v1121 = vpack.c.bf16 %v980, %v977
        %v1122 = vpack.c.bf16 %v988, %v985
        %v1123 = vpack.c.bf16 %v996, %v993
        %v1124 = vpack.c.bf16 %v1004, %v1001
        %v1125 = vpack.c.bf16 %v1012, %v1009
        %v1126 = vpack.c.bf16 %v1020, %v1017
        %v1127 = vpack.c.bf16 %v1028, %v1025
        %v1128 = vpack.c.bf16 %v1036, %v1033
        %v1129 = vpack.c.bf16 %v1044, %v1041
        %v1130 = vpack.c.bf16 %v1052, %v1049
        %v1131 = vpack.c.bf16 %v1060, %v1057
        %v1132 = vpack.c.bf16 %v1068, %v1065
        %v1133 = vpack.c.bf16 %v1076, %v1073
        %v1134 = vpack.c.bf16 %v1084, %v1081
        %1135 = vxpose.xlu0.c.b16.start [1/8] %v1103, 128
        %1136 = vxpose.xlu0.c.b16.cont [2/8] %v1104, 128
        %1137 = vxpose.xlu0.c.b16.cont [3/8] %v1105, 128
        %1138 = vxpose.xlu0.c.b16.cont [4/8] %v1106, 128
        %1139 = vxpose.xlu0.c.b16.cont [5/8] %v1107, 128
        %1140 = vxpose.xlu0.c.b16.cont [6/8] %v1108, 128
        %1141 = vxpose.xlu0.c.b16.cont [7/8] %v1109, 128
        %1142 = vxpose.xlu0.c.b16.end [8/8] %v1110, 128
        %v1143 = vpop.trf.xlu0
        %v1144 = vpop.trf.xlu0
        %v1145 = vpop.trf.xlu0
        %v1146 = vpop.trf.xlu0
        %v1147 = vpop.trf.xlu0
        %v1148 = vpop.trf.xlu0
        %v1149 = vpop.trf.xlu0
        %v1150 = vpop.trf.xlu0
        %1151 = vxpose.xlu0.c.b16.start [1/8] %v1111, 128
        %1152 = vxpose.xlu0.c.b16.cont [2/8] %v1112, 128
        %1153 = vxpose.xlu0.c.b16.cont [3/8] %v1113, 128
        %1154 = vxpose.xlu0.c.b16.cont [4/8] %v1114, 128
        %1155 = vxpose.xlu0.c.b16.cont [5/8] %v1115, 128
        %1156 = vxpose.xlu0.c.b16.cont [6/8] %v1116, 128
        %1157 = vxpose.xlu0.c.b16.cont [7/8] %v1117, 128
        %1158 = vxpose.xlu0.c.b16.end [8/8] %v1118, 128
        %v1159 = vpop.trf.xlu0
        %v1160 = vpop.trf.xlu0
        %v1161 = vpop.trf.xlu0
        %v1162 = vpop.trf.xlu0
        %v1163 = vpop.trf.xlu0
        %v1164 = vpop.trf.xlu0
        %v1165 = vpop.trf.xlu0
        %v1166 = vpop.trf.xlu0
        %1167 = vmatprep.subr.bf16.mxu0 0
        %1168 = vmatpush1.bf16.msra.mxu0 %v1119
        %1169 = vmatprep.subr.bf16.mxu0 0
        %1170 = vmatpush1.bf16.msra.mxu0 %v1120
        %1171 = vmatprep.subr.bf16.mxu0 0
        %1172 = vmatpush1.bf16.msra.mxu0 %v1121
        %1173 = vmatprep.subr.bf16.mxu0 0
        %1174 = vmatpush1.bf16.msra.mxu0 %v1122
        %1175 = vmatprep.subr.bf16.mxu0 0
        %1176 = vmatpush1.bf16.msra.mxu0 %v1123
        %1177 = vmatprep.subr.bf16.mxu0 0
        %1178 = vmatpush1.bf16.msra.mxu0 %v1124
        %1179 = vmatprep.subr.bf16.mxu0 0
        %1180 = vmatpush1.bf16.msra.mxu0 %v1125
        %1181 = vmatprep.subr.bf16.mxu0 0
        %1182 = vmatpush1.bf16.msra.mxu0 %v1126
        %1183 = vmatprep.subr.bf16.mxu0 0
        %1184 = vmatpush1.bf16.msra.mxu0 %v1127
        %1185 = vmatprep.subr.bf16.mxu0 0
        %1186 = vmatpush1.bf16.msra.mxu0 %v1128
        %1187 = vmatprep.subr.bf16.mxu0 0
        %1188 = vmatpush1.bf16.msra.mxu0 %v1129
        %1189 = vmatprep.subr.bf16.mxu0 0
        %1190 = vmatpush1.bf16.msra.mxu0 %v1130
        %1191 = vmatprep.subr.bf16.mxu0 0
        %1192 = vmatpush1.bf16.msra.mxu0 %v1131
        %1193 = vmatprep.subr.bf16.mxu0 0
        %1194 = vmatpush1.bf16.msra.mxu0 %v1132
        %1195 = vmatprep.subr.bf16.mxu0 0
        %1196 = vmatpush1.bf16.msra.mxu0 %v1133
        %1197 = vmatprep.subr.bf16.mxu0 0
        %1198 = vmatpush1.bf16.msra.mxu0 %v1134
        %1199 = vmatprep.mubr.bf16.mxu0 %v1159
        %1200 = vmatmul.mubr.bf16.gmra.mrb[0].mxu0 %v1143
        %v1201 = vpop.f32.mrb[0].mxu0
        %v1202 = vadd.f32 0.0, %v1201
        %v1203 = vpop.f32.mrb[0].mxu0
        %v1204 = vpop.f32.mrb[0].mxu0
        %v1205 = vadd.f32 0.0, %v1204
        %v1206 = vpop.f32.mrb[0].mxu0
        %1207 = vmatprep.mubr.bf16.mxu0 %v1160
        %1208 = vmatmul.mubr.bf16.gmra.mrb[0].mxu0 %v1144
        %v1209 = vpop.f32.mrb[0].mxu0
        %v1210 = vadd.f32 0.0, %v1209
        %v1211 = vpop.f32.mrb[0].mxu0
        %v1212 = vpop.f32.mrb[0].mxu0
        %v1213 = vadd.f32 0.0, %v1212
        %v1214 = vpop.f32.mrb[0].mxu0
        %1215 = vmatprep.mubr.bf16.mxu0 %v1161
        %1216 = vmatmul.mubr.bf16.gmra.mrb[0].mxu0 %v1145
        %v1217 = vpop.f32.mrb[0].mxu0
        %v1218 = vadd.f32 0.0, %v1217
        %v1219 = vpop.f32.mrb[0].mxu0
        %v1220 = vpop.f32.mrb[0].mxu0
        %v1221 = vadd.f32 0.0, %v1220
        %v1222 = vpop.f32.mrb[0].mxu0
        %1223 = vmatprep.mubr.bf16.mxu0 %v1162
        %1224 = vmatmul.mubr.bf16.gmra.mrb[0].mxu0 %v1146
        %v1225 = vpop.f32.mrb[0].mxu0
        %v1226 = vadd.f32 0.0, %v1225
        %v1227 = vpop.f32.mrb[0].mxu0
        %v1228 = vpop.f32.mrb[0].mxu0
        %v1229 = vadd.f32 0.0, %v1228
        %v1230 = vpop.f32.mrb[0].mxu0
        %1231 = vmatprep.mubr.bf16.mxu0 %v1163
        %1232 = vmatmul.mubr.bf16.gmra.mrb[0].mxu0 %v1147
        %v1233 = vpop.f32.mrb[0].mxu0
        %v1234 = vadd.f32 0.0, %v1233
        %v1235 = vpop.f32.mrb[0].mxu0
        %v1236 = vpop.f32.mrb[0].mxu0
        %v1237 = vadd.f32 0.0, %v1236
        %v1238 = vpop.f32.mrb[0].mxu0
        %1239 = vmatprep.mubr.bf16.mxu0 %v1164
        %1240 = vmatmul.mubr.bf16.gmra.mrb[0].mxu0 %v1148
        %v1241 = vpop.f32.mrb[0].mxu0
        %v1242 = vadd.f32 0.0, %v1241
        %v1243 = vpop.f32.mrb[0].mxu0
        %v1244 = vpop.f32.mrb[0].mxu0
        %v1245 = vadd.f32 0.0, %v1244
        %v1246 = vpop.f32.mrb[0].mxu0
        %1247 = vmatprep.mubr.bf16.mxu0 %v1165
        %1248 = vmatmul.mubr.bf16.gmra.mrb[0].mxu0 %v1149
        %v1249 = vpop.f32.mrb[0].mxu0
        %v1250 = vadd.f32 0.0, %v1249
        %v1251 = vpop.f32.mrb[0].mxu0
        %v1252 = vpop.f32.mrb[0].mxu0
        %v1253 = vadd.f32 0.0, %v1252
        %v1254 = vpop.f32.mrb[0].mxu0
        %1255 = vmatprep.mubr.bf16.mxu0 %v1166
        %1256 = vmatmul.mubr.bf16.gmra.mrb[0].mxu0 %v1150
        %v1257 = vpop.f32.mrb[0].mxu0
        %v1258 = vadd.f32 0.0, %v1257
        %v1259 = vpop.f32.mrb[0].mxu0
        %v1260 = vpop.f32.mrb[0].mxu0
        %v1261 = vadd.f32 0.0, %v1260
        %v1262 = vpop.f32.mrb[0].mxu0
        %1263 = vdwg.mxu0
        %v1264 = vadd.f32 %v1087, %v1202
        %v1265 = vadd.f32 %v1088, %v1205
        %v1266 = vadd.f32 %v1089, %v1210
        %v1267 = vadd.f32 %v1090, %v1213
        %v1268 = vadd.f32 %v1091, %v1218
        %v1269 = vadd.f32 %v1092, %v1221
        %v1270 = vadd.f32 %v1093, %v1226
        %v1271 = vadd.f32 %v1094, %v1229
        %v1272 = vadd.f32 %v1095, %v1234
        %v1273 = vadd.f32 %v1096, %v1237
        %v1274 = vadd.f32 %v1097, %v1242
        %v1275 = vadd.f32 %v1098, %v1245
        %v1276 = vadd.f32 %v1099, %v1250
        %v1277 = vadd.f32 %v1100, %v1253
        %v1278 = vadd.f32 %v1101, %v1258
        %v1279 = vadd.f32 %v1102, %v1261
        %1280 = vst [vmem:[#allocation2] sm:$0xff] %v1264
        %1281 = vst [vmem:[#allocation2 + $0x8] sm:$0xff] %v1265
        %1282 = vst [vmem:[#allocation2 + $0x10] sm:$0xff] %v1266
        %1283 = vst [vmem:[#allocation2 + $0x18] sm:$0xff] %v1267
        %1284 = vst [vmem:[#allocation2 + $0x20] sm:$0xff] %v1268
        %1285 = vst [vmem:[#allocation2 + $0x28] sm:$0xff] %v1269
        %1286 = vst [vmem:[#allocation2 + $0x30] sm:$0xff] %v1270
        %1287 = vst [vmem:[#allocation2 + $0x38] sm:$0xff] %v1271
        %1288 = vst [vmem:[#allocation2 + $0x40] sm:$0xff] %v1272
        %1289 = vst [vmem:[#allocation2 + $0x48] sm:$0xff] %v1273
        %1290 = vst [vmem:[#allocation2 + $0x50] sm:$0xff] %v1274
        %1291 = vst [vmem:[#allocation2 + $0x58] sm:$0xff] %v1275
        %1292 = vst [vmem:[#allocation2 + $0x60] sm:$0xff] %v1276
        %1293 = vst [vmem:[#allocation2 + $0x68] sm:$0xff] %v1277
        %1294 = vst [vmem:[#allocation2 + $0x70] sm:$0xff] %v1278
        %1295 = vst [vmem:[#allocation2 + $0x78] sm:$0xff] %v1279
        // Predicated region
        $region89: #{tpu_custom_call.1} parent=51 // pred_check
          %p1296 = pneg %p475
        $region90: #{tpu_custom_call.1} parent=51 // pred_check_branch
          %1298 = sbr.rel (%p1296) target = $region92
        $region91: #{tpu_custom_call.1} parent=51 // pred_region
          %v1299 = vld [vmem:[#allocation2] sm:$0xff]
          %v1300 = vld [vmem:[#allocation2 + $0x8] sm:$0xff]
          %v1301 = vld [vmem:[#allocation2 + $0x10] sm:$0xff]
          %v1302 = vld [vmem:[#allocation2 + $0x18] sm:$0xff]
          %v1303 = vld [vmem:[#allocation2 + $0x20] sm:$0xff]
          %v1304 = vld [vmem:[#allocation2 + $0x28] sm:$0xff]
          %v1305 = vld [vmem:[#allocation2 + $0x30] sm:$0xff]
          %v1306 = vld [vmem:[#allocation2 + $0x38] sm:$0xff]
          %v1307 = vld [vmem:[#allocation2 + $0x40] sm:$0xff]
          %v1308 = vld [vmem:[#allocation2 + $0x48] sm:$0xff]
          %v1309 = vld [vmem:[#allocation2 + $0x50] sm:$0xff]
          %v1310 = vld [vmem:[#allocation2 + $0x58] sm:$0xff]
          %v1311 = vld [vmem:[#allocation2 + $0x60] sm:$0xff]
          %v1312 = vld [vmem:[#allocation2 + $0x68] sm:$0xff]
          %v1313 = vld [vmem:[#allocation2 + $0x70] sm:$0xff]
          %v1314 = vld [vmem:[#allocation2 + $0x78] sm:$0xff]
          %v1315 = vlaneseq
          %v1316 = vand.u32 %v1315, 127
          %vm1317 = vcmp.lt.s32.totalorder %v1316, 4
          %v1318 = vsel %vm1317, %v1299, -1e+30
          %v1319 = vsel %vm1317, %v1300, -1e+30
          %v1320 = vsel %vm1317, %v1301, -1e+30
          %v1321 = vsel %vm1317, %v1302, -1e+30
          %v1322 = vsel %vm1317, %v1303, -1e+30
          %v1323 = vsel %vm1317, %v1304, -1e+30
          %v1324 = vsel %vm1317, %v1305, -1e+30
          %v1325 = vsel %vm1317, %v1306, -1e+30
          %v1326 = vsel %vm1317, %v1307, -1e+30
          %v1327 = vsel %vm1317, %v1308, -1e+30
          %v1328 = vsel %vm1317, %v1309, -1e+30
          %v1329 = vsel %vm1317, %v1310, -1e+30
          %v1330 = vsel %vm1317, %v1311, -1e+30
          %v1331 = vsel %vm1317, %v1312, -1e+30
          %v1332 = vsel %vm1317, %v1313, -1e+30
          %v1333 = vsel %vm1317, %v1314, -1e+30
          %1334 = vmax.xlane.f32.xlu0 %v1318
          %v1335 = vpop.xlane.xlu0 %1334
          %1336 = vmax.xlane.f32.xlu0 %v1319
          %v1337 = vpop.xlane.xlu0 %1336
          %1338 = vmax.xlane.f32.xlu0 %v1320
          %v1339 = vpop.xlane.xlu0 %1338
          %1340 = vmax.xlane.f32.xlu0 %v1321
          %v1341 = vpop.xlane.xlu0 %1340
          %1342 = vmax.xlane.f32.xlu0 %v1322
          %v1343 = vpop.xlane.xlu0 %1342
          %1344 = vmax.xlane.f32.xlu0 %v1323
          %v1345 = vpop.xlane.xlu0 %1344
          %1346 = vmax.xlane.f32.xlu0 %v1324
          %v1347 = vpop.xlane.xlu0 %1346
          %1348 = vmax.xlane.f32.xlu0 %v1325
          %v1349 = vpop.xlane.xlu0 %1348
          %1350 = vmax.xlane.f32.xlu0 %v1326
          %v1351 = vpop.xlane.xlu0 %1350
          %1352 = vmax.xlane.f32.xlu0 %v1327
          %v1353 = vpop.xlane.xlu0 %1352
          %1354 = vmax.xlane.f32.xlu0 %v1328
          %v1355 = vpop.xlane.xlu0 %1354
          %1356 = vmax.xlane.f32.xlu0 %v1329
          %v1357 = vpop.xlane.xlu0 %1356
          %1358 = vmax.xlane.f32.xlu0 %v1330
          %v1359 = vpop.xlane.xlu0 %1358
          %1360 = vmax.xlane.f32.xlu0 %v1331
          %v1361 = vpop.xlane.xlu0 %1360
          %1362 = vmax.xlane.f32.xlu0 %v1332
          %v1363 = vpop.xlane.xlu0 %1362
          %1364 = vmax.xlane.f32.xlu0 %v1333
          %v1365 = vpop.xlane.xlu0 %1364
          %v1366 = vsub.f32 %v1318, %v1335
          %v1367 = vsub.f32 %v1319, %v1337
          %v1368 = vsub.f32 %v1320, %v1339
          %v1369 = vsub.f32 %v1321, %v1341
          %v1370 = vsub.f32 %v1322, %v1343
          %v1371 = vsub.f32 %v1323, %v1345
          %v1372 = vsub.f32 %v1324, %v1347
          %v1373 = vsub.f32 %v1325, %v1349
          %v1374 = vsub.f32 %v1326, %v1351
          %v1375 = vsub.f32 %v1327, %v1353
          %v1376 = vsub.f32 %v1328, %v1355
          %v1377 = vsub.f32 %v1329, %v1357
          %v1378 = vsub.f32 %v1330, %v1359
          %v1379 = vsub.f32 %v1331, %v1361
          %v1380 = vsub.f32 %v1332, %v1363
          %v1381 = vsub.f32 %v1333, %v1365
          %v1382 = vmul.f32 %v1366, 1.442695
          %v1383 = vpow.pop %v1382
          %v1384 = vmul.f32 %v1367, 1.442695
          %v1385 = vpow.pop %v1384
          %v1386 = vmul.f32 %v1368, 1.442695
          %v1387 = vpow.pop %v1386
          %v1388 = vmul.f32 %v1369, 1.442695
          %v1389 = vpow.pop %v1388
          %v1390 = vmul.f32 %v1370, 1.442695
          %v1391 = vpow.pop %v1390
          %v1392 = vmul.f32 %v1371, 1.442695
          %v1393 = vpow.pop %v1392
          %v1394 = vmul.f32 %v1372, 1.442695
          %v1395 = vpow.pop %v1394
          %v1396 = vmul.f32 %v1373, 1.442695
          %v1397 = vpow.pop %v1396
          %v1398 = vmul.f32 %v1374, 1.442695
          %v1399 = vpow.pop %v1398
          %v1400 = vmul.f32 %v1375, 1.442695
          %v1401 = vpow.pop %v1400
          %v1402 = vmul.f32 %v1376, 1.442695
          %v1403 = vpow.pop %v1402
          %v1404 = vmul.f32 %v1377, 1.442695
          %v1405 = vpow.pop %v1404
          %v1406 = vmul.f32 %v1378, 1.442695
          %v1407 = vpow.pop %v1406
          %v1408 = vmul.f32 %v1379, 1.442695
          %v1409 = vpow.pop %v1408
          %v1410 = vmul.f32 %v1380, 1.442695
          %v1411 = vpow.pop %v1410
          %v1412 = vmul.f32 %v1381, 1.442695
          %v1413 = vpow.pop %v1412
          %1414 = vadd.xlane.f32.xlu0 %v1383
          %v1415 = vpop.xlane.xlu0 %1414
          %1416 = vadd.xlane.f32.xlu0 %v1385
          %v1417 = vpop.xlane.xlu0 %1416
          %1418 = vadd.xlane.f32.xlu0 %v1387
          %v1419 = vpop.xlane.xlu0 %1418
          %1420 = vadd.xlane.f32.xlu0 %v1389
          %v1421 = vpop.xlane.xlu0 %1420
          %1422 = vadd.xlane.f32.xlu0 %v1391
          %v1423 = vpop.xlane.xlu0 %1422
          %1424 = vadd.xlane.f32.xlu0 %v1393
          %v1425 = vpop.xlane.xlu0 %1424
          %1426 = vadd.xlane.f32.xlu0 %v1395
          %v1427 = vpop.xlane.xlu0 %1426
          %1428 = vadd.xlane.f32.xlu0 %v1397
          %v1429 = vpop.xlane.xlu0 %1428
          %1430 = vadd.xlane.f32.xlu0 %v1399
          %v1431 = vpop.xlane.xlu0 %1430
          %1432 = vadd.xlane.f32.xlu0 %v1401
          %v1433 = vpop.xlane.xlu0 %1432
          %1434 = vadd.xlane.f32.xlu0 %v1403
          %v1435 = vpop.xlane.xlu0 %1434
          %1436 = vadd.xlane.f32.xlu0 %v1405
          %v1437 = vpop.xlane.xlu0 %1436
          %1438 = vadd.xlane.f32.xlu0 %v1407
          %v1439 = vpop.xlane.xlu0 %1438
          %1440 = vadd.xlane.f32.xlu0 %v1409
          %v1441 = vpop.xlane.xlu0 %1440
          %1442 = vadd.xlane.f32.xlu0 %v1411
          %v1443 = vpop.xlane.xlu0 %1442
          %1444 = vadd.xlane.f32.xlu0 %v1413
          %v1445 = vpop.xlane.xlu0 %1444
          %v1446 = vrcp.pop %v1415
          %v1447 = vrcp.pop %v1417
          %v1448 = vrcp.pop %v1419
          %v1449 = vrcp.pop %v1421
          %v1450 = vrcp.pop %v1423
          %v1451 = vrcp.pop %v1425
          %v1452 = vrcp.pop %v1427
          %v1453 = vrcp.pop %v1429
          %v1454 = vrcp.pop %v1431
          %v1455 = vrcp.pop %v1433
          %v1456 = vrcp.pop %v1435
          %v1457 = vrcp.pop %v1437
          %v1458 = vrcp.pop %v1439
          %v1459 = vrcp.pop %v1441
          %v1460 = vrcp.pop %v1443
          %v1461 = vrcp.pop %v1445
          %v1462 = vmul.f32 %v1383, %v1446
          %v1463 = vmul.f32 %v1385, %v1447
          %v1464 = vmul.f32 %v1387, %v1448
          %v1465 = vmul.f32 %v1389, %v1449
          %v1466 = vmul.f32 %v1391, %v1450
          %v1467 = vmul.f32 %v1393, %v1451
          %v1468 = vmul.f32 %v1395, %v1452
          %v1469 = vmul.f32 %v1397, %v1453
          %v1470 = vmul.f32 %v1399, %v1454
          %v1471 = vmul.f32 %v1401, %v1455
          %v1472 = vmul.f32 %v1403, %v1456
          %v1473 = vmul.f32 %v1405, %v1457
          %v1474 = vmul.f32 %v1407, %v1458
          %v1475 = vmul.f32 %v1409, %v1459
          %v1476 = vmul.f32 %v1411, %v1460
          %v1477 = vmul.f32 %v1413, %v1461
          %v1478 = vld [vmem:[#allocation12] sm:$0xff]
          %v1479 = vld [vmem:[#allocation12 + $0x8] sm:$0xff]
          %v1480 = vld [vmem:[#allocation12 + $0x10] sm:$0xff]
          %v1481 = vld [vmem:[#allocation12 + $0x18] sm:$0xff]
          %v1482 = vld [vmem:[#allocation12 + $0x20] sm:$0xff]
          %v1483 = vld [vmem:[#allocation12 + $0x28] sm:$0xff]
          %v1484 = vld [vmem:[#allocation12 + $0x30] sm:$0xff]
          %v1485 = vld [vmem:[#allocation12 + $0x38] sm:$0xff]
          %v1486 = vld [vmem:[#allocation12 + $0x40] sm:$0xff]
          %v1487 = vld [vmem:[#allocation12 + $0x48] sm:$0xff]
          %v1488 = vld [vmem:[#allocation12 + $0x50] sm:$0xff]
          %v1489 = vld [vmem:[#allocation12 + $0x58] sm:$0xff]
          %v1490 = vld [vmem:[#allocation12 + $0x60] sm:$0xff]
          %v1491 = vld [vmem:[#allocation12 + $0x68] sm:$0xff]
          %v1492 = vld [vmem:[#allocation12 + $0x70] sm:$0xff]
          %v1493 = vld [vmem:[#allocation12 + $0x78] sm:$0xff]
          %v1494 = vld [vmem:[#allocation12 + $0x80] sm:$0xff]
          %1495 = vmatprep.subr.mxu0 0.0
          %1496 = vmatpush1.msra.mxu0 %v1462
          %1497 = vmatprep.subr.mxu0 0.0
          %1498 = vmatpush1.msra.mxu0 %v1463
          %1499 = vmatprep.subr.mxu0 0.0
          %1500 = vmatpush1.msra.mxu0 %v1464
          %1501 = vmatprep.subr.mxu0 0.0
          %1502 = vmatpush1.msra.mxu0 %v1465
          %1503 = vmatprep.subr.mxu0 0.0
          %1504 = vmatpush1.msra.mxu0 %v1466
          %1505 = vmatprep.subr.mxu0 0.0
          %1506 = vmatpush1.msra.mxu0 %v1467
          %1507 = vmatprep.subr.mxu0 0.0
          %1508 = vmatpush1.msra.mxu0 %v1468
          %1509 = vmatprep.subr.mxu0 0.0
          %1510 = vmatpush1.msra.mxu0 %v1469
          %1511 = vmatprep.subr.mxu0 0.0
          %1512 = vmatpush1.msra.mxu0 %v1470
          %1513 = vmatprep.subr.mxu0 0.0
          %1514 = vmatpush1.msra.mxu0 %v1471
          %1515 = vmatprep.subr.mxu0 0.0
          %1516 = vmatpush1.msra.mxu0 %v1472
          %1517 = vmatprep.subr.mxu0 0.0
          %1518 = vmatpush1.msra.mxu0 %v1473
          %1519 = vmatprep.subr.mxu0 0.0
          %1520 = vmatpush1.msra.mxu0 %v1474
          %1521 = vmatprep.subr.mxu0 0.0
          %1522 = vmatpush1.msra.mxu0 %v1475
          %1523 = vmatprep.subr.mxu0 0.0
          %1524 = vmatpush1.msra.mxu0 %v1476
          %1525 = vmatprep.subr.mxu0 0.0
          %1526 = vmatpush1.msra.mxu0 %v1477
          %1527 = vmatprep.subr.mxu0 0.0
          %1528 = vmatpush1.msra.mxu0 0.0
          %1529 = vmatprep.subr.mxu0 0.0
          %1530 = vmatpush1.msra.mxu0 0.0
          %1531 = vmatprep.subr.mxu0 0.0
          %1532 = vmatpush1.msra.mxu0 0.0
          %1533 = vmatprep.subr.mxu0 0.0
          %1534 = vmatpush1.msra.mxu0 0.0
          %1535 = vmatprep.subr.mxu0 0.0
          %1536 = vmatpush1.msra.mxu0 0.0
          %1537 = vmatprep.subr.mxu0 0.0
          %1538 = vmatpush1.msra.mxu0 0.0
          %1539 = vmatprep.subr.mxu0 0.0
          %1540 = vmatpush1.msra.mxu0 0.0
          %1541 = vmatprep.subr.mxu0 0.0
          %1542 = vmatpush1.msra.mxu0 0.0
          %1543 = vmatprep.subr.mxu0 0.0
          %1544 = vmatpush1.msra.mxu0 0.0
          %1545 = vmatprep.subr.mxu0 0.0
          %1546 = vmatpush1.msra.mxu0 0.0
          %1547 = vmatprep.subr.mxu0 0.0
          %1548 = vmatpush1.msra.mxu0 0.0
          %1549 = vmatprep.subr.mxu0 0.0
          %1550 = vmatpush1.msra.mxu0 0.0
          %1551 = vmatprep.subr.mxu0 0.0
          %1552 = vmatpush1.msra.mxu0 0.0
          %1553 = vmatprep.subr.mxu0 0.0
          %1554 = vmatpush1.msra.mxu0 0.0
          %1555 = vmatprep.subr.mxu0 0.0
          %1556 = vmatpush1.msra.mxu0 0.0
          %1557 = vmatprep.subr.mxu0 0.0
          %1558 = vmatpush1.msra.mxu0 0.0
          %1559 = vmatprep.mubr.f32.mxu0 0.0
          %1560 = vmatmul.mubr.f32.gmra.mrb[0].mxu0 %v1478
          %v1561 = vpop.f32.mrb[0].mxu0
          %v1562 = vadd.f32 0.0, %v1561
          %v1563 = vpop.f32.mrb[0].mxu0
          %1564 = vmatprep.mubr.f32.mxu0 0.0
          %1565 = vmatmul.mubr.f32.gmra.mrb[0].mxu0 %v1479
          %v1566 = vpop.f32.mrb[0].mxu0
          %v1567 = vadd.f32 0.0, %v1566
          %v1568 = vpop.f32.mrb[0].mxu0
          %1569 = vmatprep.mubr.f32.mxu0 0.0
          %1570 = vmatmul.mubr.f32.gmra.mrb[0].mxu0 %v1480
          %v1571 = vpop.f32.mrb[0].mxu0
          %v1572 = vadd.f32 0.0, %v1571
          %v1573 = vpop.f32.mrb[0].mxu0
          %1574 = vmatprep.mubr.f32.mxu0 0.0
          %1575 = vmatmul.mubr.f32.gmra.mrb[0].mxu0 %v1481
          %v1576 = vpop.f32.mrb[0].mxu0
          %v1577 = vadd.f32 0.0, %v1576
          %v1578 = vpop.f32.mrb[0].mxu0
          %1579 = vmatprep.mubr.f32.mxu0 0.0
          %1580 = vmatmul.mubr.f32.gmra.mrb[0].mxu0 %v1482
          %v1581 = vpop.f32.mrb[0].mxu0
          %v1582 = vadd.f32 0.0, %v1581
          %v1583 = vpop.f32.mrb[0].mxu0
          %1584 = vmatprep.mubr.f32.mxu0 0.0
          %1585 = vmatmul.mubr.f32.gmra.mrb[0].mxu0 %v1483
          %v1586 = vpop.f32.mrb[0].mxu0
          %v1587 = vadd.f32 0.0, %v1586
          %v1588 = vpop.f32.mrb[0].mxu0
          %1589 = vmatprep.mubr.f32.mxu0 0.0
          %1590 = vmatmul.mubr.f32.gmra.mrb[0].mxu0 %v1484
          %v1591 = vpop.f32.mrb[0].mxu0
          %v1592 = vadd.f32 0.0, %v1591
          %v1593 = vpop.f32.mrb[0].mxu0
          %1594 = vmatprep.mubr.f32.mxu0 0.0
          %1595 = vmatmul.mubr.f32.gmra.mrb[0].mxu0 %v1485
          %v1596 = vpop.f32.mrb[0].mxu0
          %v1597 = vadd.f32 0.0, %v1596
          %v1598 = vpop.f32.mrb[0].mxu0
          %1599 = vmatprep.mubr.f32.mxu0 0.0
          %1600 = vmatmul.mubr.f32.gmra.mrb[0].mxu0 %v1486
          %v1601 = vpop.f32.mrb[0].mxu0
          %v1602 = vadd.f32 0.0, %v1601
          %v1603 = vpop.f32.mrb[0].mxu0
          %1604 = vmatprep.mubr.f32.mxu0 0.0
          %1605 = vmatmul.mubr.f32.gmra.mrb[0].mxu0 %v1487
          %v1606 = vpop.f32.mrb[0].mxu0
          %v1607 = vadd.f32 0.0, %v1606
          %v1608 = vpop.f32.mrb[0].mxu0
          %1609 = vmatprep.mubr.f32.mxu0 0.0
          %1610 = vmatmul.mubr.f32.gmra.mrb[0].mxu0 %v1488
          %v1611 = vpop.f32.mrb[0].mxu0
          %v1612 = vadd.f32 0.0, %v1611
          %v1613 = vpop.f32.mrb[0].mxu0
          %1614 = vmatprep.mubr.f32.mxu0 0.0
          %1615 = vmatmul.mubr.f32.gmra.mrb[0].mxu0 %v1489
          %v1616 = vpop.f32.mrb[0].mxu0
          %v1617 = vadd.f32 0.0, %v1616
          %v1618 = vpop.f32.mrb[0].mxu0
          %1619 = vmatprep.mubr.f32.mxu0 0.0
          %1620 = vmatmul.mubr.f32.gmra.mrb[0].mxu0 %v1490
          %v1621 = vpop.f32.mrb[0].mxu0
          %v1622 = vadd.f32 0.0, %v1621
          %v1623 = vpop.f32.mrb[0].mxu0
          %1624 = vmatprep.mubr.f32.mxu0 0.0
          %1625 = vmatmul.mubr.f32.gmra.mrb[0].mxu0 %v1491
          %v1626 = vpop.f32.mrb[0].mxu0
          %v1627 = vadd.f32 0.0, %v1626
          %v1628 = vpop.f32.mrb[0].mxu0
          %1629 = vmatprep.mubr.f32.mxu0 0.0
          %1630 = vmatmul.mubr.f32.gmra.mrb[0].mxu0 %v1492
          %v1631 = vpop.f32.mrb[0].mxu0
          %v1632 = vadd.f32 0.0, %v1631
          %v1633 = vpop.f32.mrb[0].mxu0
          %1634 = vmatprep.mubr.f32.mxu0 0.0
          %1635 = vmatmul.mubr.f32.gmra.mrb[0].mxu0 %v1493
          %v1636 = vpop.f32.mrb[0].mxu0
          %v1637 = vadd.f32 0.0, %v1636
          %v1638 = vpop.f32.mrb[0].mxu0
          %1639 = vmatprep.mubr.f32.mxu0 0.0
          %1640 = vmatmul.mubr.f32.gmra.mrb[0].mxu0 %v1494
          %v1641 = vpop.f32.mrb[0].mxu0
          %v1642 = vadd.f32 0.0, %v1641
          %v1643 = vpop.f32.mrb[0].mxu0
          %1644 = vdwg.mxu0
          %v1645 = vld [vmem:[#allocation14] sm:$0xff]
          %v1646 = vld [vmem:[#allocation14 + $0x8] sm:$0xff]
          %v1647 = vld [vmem:[#allocation14 + $0x10] sm:$0xff]
          %v1648 = vld [vmem:[#allocation14 + $0x18] sm:$0xff]
          %v1649 = vld [vmem:[#allocation14 + $0x20] sm:$0xff]
          %v1650 = vld [vmem:[#allocation14 + $0x28] sm:$0xff]
          %v1651 = vld [vmem:[#allocation14 + $0x30] sm:$0xff]
          %v1652 = vld [vmem:[#allocation14 + $0x38] sm:$0xff]
          %v1653 = vld [vmem:[#allocation14 + $0x40] sm:$0xff]
          %v1654 = vld [vmem:[#allocation14 + $0x48] sm:$0xff]
          %v1655 = vld [vmem:[#allocation14 + $0x50] sm:$0xff]
          %v1656 = vld [vmem:[#allocation14 + $0x58] sm:$0xff]
          %v1657 = vld [vmem:[#allocation14 + $0x60] sm:$0xff]
          %v1658 = vld [vmem:[#allocation14 + $0x68] sm:$0xff]
          %v1659 = vld [vmem:[#allocation14 + $0x70] sm:$0xff]
          %v1660 = vld [vmem:[#allocation14 + $0x78] sm:$0xff]
          %1661 = vmatprep.subr.mxu0 0.0
          %1662 = vmatpush1.msra.mxu0 %v1645
          %1663 = vmatprep.subr.mxu0 0.0
          %1664 = vmatpush1.msra.mxu0 %v1646
          %1665 = vmatprep.subr.mxu0 0.0
          %1666 = vmatpush1.msra.mxu0 %v1647
          %1667 = vmatprep.subr.mxu0 0.0
          %1668 = vmatpush1.msra.mxu0 %v1648
          %1669 = vmatprep.subr.mxu0 0.0
          %1670 = vmatpush1.msra.mxu0 %v1649
          %1671 = vmatprep.subr.mxu0 0.0
          %1672 = vmatpush1.msra.mxu0 %v1650
          %1673 = vmatprep.subr.mxu0 0.0
          %1674 = vmatpush1.msra.mxu0 %v1651
          %1675 = vmatprep.subr.mxu0 0.0
          %1676 = vmatpush1.msra.mxu0 %v1652
          %1677 = vmatprep.subr.mxu0 0.0
          %1678 = vmatpush1.msra.mxu0 %v1653
          %1679 = vmatprep.subr.mxu0 0.0
          %1680 = vmatpush1.msra.mxu0 %v1654
          %1681 = vmatprep.subr.mxu0 0.0
          %1682 = vmatpush1.msra.mxu0 %v1655
          %1683 = vmatprep.subr.mxu0 0.0
          %1684 = vmatpush1.msra.mxu0 %v1656
          %1685 = vmatprep.subr.mxu0 0.0
          %1686 = vmatpush1.msra.mxu0 %v1657
          %1687 = vmatprep.subr.mxu0 0.0
          %1688 = vmatpush1.msra.mxu0 %v1658
          %1689 = vmatprep.subr.mxu0 0.0
          %1690 = vmatpush1.msra.mxu0 %v1659
          %1691 = vmatprep.subr.mxu0 0.0
          %1692 = vmatpush1.msra.mxu0 %v1660
          %1693 = vmatprep.subr.mxu0 0.0
          %1694 = vmatpush1.msra.mxu0 0.0
          %1695 = vmatprep.subr.mxu0 0.0
          %1696 = vmatpush1.msra.mxu0 0.0
          %1697 = vmatprep.subr.mxu0 0.0
          %1698 = vmatpush1.msra.mxu0 0.0
          %1699 = vmatprep.subr.mxu0 0.0
          %1700 = vmatpush1.msra.mxu0 0.0
          %1701 = vmatprep.subr.mxu0 0.0
          %1702 = vmatpush1.msra.mxu0 0.0
          %1703 = vmatprep.subr.mxu0 0.0
          %1704 = vmatpush1.msra.mxu0 0.0
          %1705 = vmatprep.subr.mxu0 0.0
          %1706 = vmatpush1.msra.mxu0 0.0
          %1707 = vmatprep.subr.mxu0 0.0
          %1708 = vmatpush1.msra.mxu0 0.0
          %1709 = vmatprep.subr.mxu0 0.0
          %1710 = vmatpush1.msra.mxu0 0.0
          %1711 = vmatprep.subr.mxu0 0.0
          %1712 = vmatpush1.msra.mxu0 0.0
          %1713 = vmatprep.subr.mxu0 0.0
          %1714 = vmatpush1.msra.mxu0 0.0
          %1715 = vmatprep.subr.mxu0 0.0
          %1716 = vmatpush1.msra.mxu0 0.0
          %1717 = vmatprep.subr.mxu0 0.0
          %1718 = vmatpush1.msra.mxu0 0.0
          %1719 = vmatprep.subr.mxu0 0.0
          %1720 = vmatpush1.msra.mxu0 0.0
          %1721 = vmatprep.subr.mxu0 0.0
          %1722 = vmatpush1.msra.mxu0 0.0
          %1723 = vmatprep.subr.mxu0 0.0
          %1724 = vmatpush1.msra.mxu0 0.0
          %1725 = vmatprep.mubr.f32.mxu0 0.0
          %1726 = vmatmul.mubr.f32.gmra.mrb[0].mxu0 %v1562
          %v1727 = vpop.f32.mrb[0].mxu0
          %v1728 = vadd.f32 0.0, %v1727
          %v1729 = vpop.f32.mrb[0].mxu0
          %1730 = vmatprep.mubr.f32.mxu0 0.0
          %1731 = vmatmul.mubr.f32.gmra.mrb[0].mxu0 %v1567
          %v1732 = vpop.f32.mrb[0].mxu0
          %v1733 = vadd.f32 0.0, %v1732
          %v1734 = vpop.f32.mrb[0].mxu0
          %1735 = vmatprep.mubr.f32.mxu0 0.0
          %1736 = vmatmul.mubr.f32.gmra.mrb[0].mxu0 %v1572
          %v1737 = vpop.f32.mrb[0].mxu0
          %v1738 = vadd.f32 0.0, %v1737
          %v1739 = vpop.f32.mrb[0].mxu0
          %1740 = vmatprep.mubr.f32.mxu0 0.0
          %1741 = vmatmul.mubr.f32.gmra.mrb[0].mxu0 %v1577
          %v1742 = vpop.f32.mrb[0].mxu0
          %v1743 = vadd.f32 0.0, %v1742
          %v1744 = vpop.f32.mrb[0].mxu0
          %1745 = vmatprep.mubr.f32.mxu0 0.0
          %1746 = vmatmul.mubr.f32.gmra.mrb[0].mxu0 %v1582
          %v1747 = vpop.f32.mrb[0].mxu0
          %v1748 = vadd.f32 0.0, %v1747
          %v1749 = vpop.f32.mrb[0].mxu0
          %1750 = vmatprep.mubr.f32.mxu0 0.0
          %1751 = vmatmul.mubr.f32.gmra.mrb[0].mxu0 %v1587
          %v1752 = vpop.f32.mrb[0].mxu0
          %v1753 = vadd.f32 0.0, %v1752
          %v1754 = vpop.f32.mrb[0].mxu0
          %1755 = vmatprep.mubr.f32.mxu0 0.0
          %1756 = vmatmul.mubr.f32.gmra.mrb[0].mxu0 %v1592
          %v1757 = vpop.f32.mrb[0].mxu0
          %v1758 = vadd.f32 0.0, %v1757
          %v1759 = vpop.f32.mrb[0].mxu0
          %1760 = vmatprep.mubr.f32.mxu0 0.0
          %1761 = vmatmul.mubr.f32.gmra.mrb[0].mxu0 %v1597
          %v1762 = vpop.f32.mrb[0].mxu0
          %v1763 = vadd.f32 0.0, %v1762
          %v1764 = vpop.f32.mrb[0].mxu0
          %1765 = vmatprep.mubr.f32.mxu0 0.0
          %1766 = vmatmul.mubr.f32.gmra.mrb[0].mxu0 %v1602
          %v1767 = vpop.f32.mrb[0].mxu0
          %v1768 = vadd.f32 0.0, %v1767
          %v1769 = vpop.f32.mrb[0].mxu0
          %1770 = vmatprep.mubr.f32.mxu0 0.0
          %1771 = vmatmul.mubr.f32.gmra.mrb[0].mxu0 %v1607
          %v1772 = vpop.f32.mrb[0].mxu0
          %v1773 = vadd.f32 0.0, %v1772
          %v1774 = vpop.f32.mrb[0].mxu0
          %1775 = vmatprep.mubr.f32.mxu0 0.0
          %1776 = vmatmul.mubr.f32.gmra.mrb[0].mxu0 %v1612
          %v1777 = vpop.f32.mrb[0].mxu0
          %v1778 = vadd.f32 0.0, %v1777
          %v1779 = vpop.f32.mrb[0].mxu0
          %1780 = vmatprep.mubr.f32.mxu0 0.0
          %1781 = vmatmul.mubr.f32.gmra.mrb[0].mxu0 %v1617
          %v1782 = vpop.f32.mrb[0].mxu0
          %v1783 = vadd.f32 0.0, %v1782
          %v1784 = vpop.f32.mrb[0].mxu0
          %1785 = vmatprep.mubr.f32.mxu0 0.0
          %1786 = vmatmul.mubr.f32.gmra.mrb[0].mxu0 %v1622
          %v1787 = vpop.f32.mrb[0].mxu0
          %v1788 = vadd.f32 0.0, %v1787
          %v1789 = vpop.f32.mrb[0].mxu0
          %1790 = vmatprep.mubr.f32.mxu0 0.0
          %1791 = vmatmul.mubr.f32.gmra.mrb[0].mxu0 %v1627
          %v1792 = vpop.f32.mrb[0].mxu0
          %v1793 = vadd.f32 0.0, %v1792
          %v1794 = vpop.f32.mrb[0].mxu0
          %1795 = vmatprep.mubr.f32.mxu0 0.0
          %1796 = vmatmul.mubr.f32.gmra.mrb[0].mxu0 %v1632
          %v1797 = vpop.f32.mrb[0].mxu0
          %v1798 = vadd.f32 0.0, %v1797
          %v1799 = vpop.f32.mrb[0].mxu0
          %1800 = vmatprep.mubr.f32.mxu0 0.0
          %1801 = vmatmul.mubr.f32.gmra.mrb[0].mxu0 %v1637
          %v1802 = vpop.f32.mrb[0].mxu0
          %v1803 = vadd.f32 0.0, %v1802
          %v1804 = vpop.f32.mrb[0].mxu0
          %1805 = vmatprep.mubr.f32.mxu0 0.0
          %1806 = vmatmul.mubr.f32.gmra.mrb[0].mxu0 %v1642
          %v1807 = vpop.f32.mrb[0].mxu0
          %v1808 = vadd.f32 0.0, %v1807
          %v1809 = vpop.f32.mrb[0].mxu0
          %1810 = vdwg.mxu0
          %v1811 = vpack.c.bf16 %v1733, %v1728
          %v1812 = vpack.c.bf16 %v1743, %v1738
          %v1813 = vpack.c.bf16 %v1753, %v1748
          %v1814 = vpack.c.bf16 %v1763, %v1758
          %v1815 = vpack.c.bf16 %v1773, %v1768
          %v1816 = vpack.c.bf16 %v1783, %v1778
          %v1817 = vpack.c.bf16 %v1793, %v1788
          %v1818 = vpack.c.bf16 %v1803, %v1798
          %v1827 = vunpack.c.l.b16 %v1811
          %v1828 = vunpack.c.h.b16 %v1811
          %v1829 = vunpack.c.l.b16 %v1812
          %v1830 = vunpack.c.h.b16 %v1812
          %v1831 = vunpack.c.l.b16 %v1813
          %v1832 = vunpack.c.h.b16 %v1813
          %v1833 = vunpack.c.l.b16 %v1814
          %v1834 = vunpack.c.h.b16 %v1814
          %v1835 = vunpack.c.l.b16 %v1815
          %v1836 = vunpack.c.h.b16 %v1815
          %v1837 = vunpack.c.l.b16 %v1816
          %v1838 = vunpack.c.h.b16 %v1816
          %v1839 = vunpack.c.l.b16 %v1817
          %v1840 = vunpack.c.h.b16 %v1817
          %v1841 = vunpack.c.l.b16 %v1818
          %v1842 = vunpack.c.h.b16 %v1818
          %v1843 = vpack.c.b16 %v1827, %v1827
          %v1844 = vpack.c.b16 %v1828, %v1828
          %v1845 = vpack.c.b16 %v1829, %v1829
          %v1846 = vpack.c.b16 %v1830, %v1830
          %v1847 = vpack.c.b16 %v1831, %v1831
          %v1848 = vpack.c.b16 %v1832, %v1832
          %v1849 = vpack.c.b16 %v1833, %v1833
          %v1850 = vpack.c.b16 %v1834, %v1834
          %v1851 = vpack.c.b16 %v1835, %v1835
          %v1852 = vpack.c.b16 %v1836, %v1836
          %v1853 = vpack.c.b16 %v1837, %v1837
          %v1854 = vpack.c.b16 %v1838, %v1838
          %v1855 = vpack.c.b16 %v1839, %v1839
          %v1856 = vpack.c.b16 %v1840, %v1840
          %v1857 = vpack.c.b16 %v1841, %v1841
          %v1858 = vpack.c.b16 %v1842, %v1842
          %1875 = vst [vmem:[%s466] sm:$0xf] %v1843
          %1876 = vst [vmem:[%s466 + $0x4] sm:$0xf] %v1844
          %1877 = vst [vmem:[%s466 + $0x8] sm:$0xf] %v1845
          %1878 = vst [vmem:[%s466 + $0xc] sm:$0xf] %v1846
          %1879 = vst [vmem:[%s466 + $0x10] sm:$0xf] %v1847
          %1880 = vst [vmem:[%s466 + $0x14] sm:$0xf] %v1848
          %1881 = vst [vmem:[%s466 + $0x18] sm:$0xf] %v1849
          %1882 = vst [vmem:[%s466 + $0x1c] sm:$0xf] %v1850
          %1883 = vst [vmem:[%s466 + $0x20] sm:$0xf] %v1851
          %1884 = vst [vmem:[%s466 + $0x24] sm:$0xf] %v1852
          %1885 = vst [vmem:[%s466 + $0x28] sm:$0xf] %v1853
          %1886 = vst [vmem:[%s466 + $0x2c] sm:$0xf] %v1854
          %1887 = vst [vmem:[%s466 + $0x30] sm:$0xf] %v1855
          %1888 = vst [vmem:[%s466 + $0x34] sm:$0xf] %v1856
          %1889 = vst [vmem:[%s466 + $0x38] sm:$0xf] %v1857
          %1890 = vst [vmem:[%s466 + $0x3c] sm:$0xf] %v1858
          %v1891 = vld [vmem:[#allocation15] sm:$0x1]
          %v1892 = vadd.f32 %v1808, %v1891
          %1893 = vst [vmem:[%s472] sm:$0x1] %v1892
        $region92: #{tpu_custom_call.1} parent=51 // pred_fallthru
          _
        %s1894 = sand.u32 %s229, 1
        %s1895 = scalar_lea.sflag [#allocation5], %s1894
        %s1896 = sand.u32 %s229, 1
        %s1897 = smul.addr %s1896, 64
        %s1898 = scalar_lea.vmem [#allocation17], %s1897
        %s1899 = sand.u32 %s255, 1
        %s1900 = scalar_lea.sflag [#allocation19], %s1899
        %s1901 = sand.u32 %s255, 1
        %s1902 = scalar_lea.vmem [#allocation18], %s1901
        // Predicated region
        $region93: #{tpu_custom_call.1} parent=51 // pred_check
          %p1903 = pneg %p239
        $region94: #{tpu_custom_call.1} parent=51 // pred_check_branch
          %1905 = sbr.rel (%p1903) target = $region96
        $region95: #{tpu_custom_call.1} parent=51 // pred_region
          %s1907 = ssub.s32 1024, 1024
          %1908 = vsyncadd %s1895, %s1907
          %s1909 = smul.addr %s38, 16
          %s1910 = smul.addr %s1909, 64
          %s1911 = scalar_lea.hbm %s8, %s1910
          %s1912 = sshll.u32 %s1898, 4
          %s1913 = int_to_ptr.vmem [resolvable:$true] %s1912
          %1918 = dma.vmem_to_hbm [thread:$0]  %s1913, 1024, %s1911, %s1895, 64, 64, 4
        $region96: #{tpu_custom_call.1} parent=51 // pred_fallthru
          _
        // Predicated region
        $region97: #{tpu_custom_call.1} parent=51 // pred_check
          %p1919 = pneg %p265
        $region98: #{tpu_custom_call.1} parent=51 // pred_check_branch
          %1921 = sbr.rel (%p1919) target = $region100
        $region99: #{tpu_custom_call.1} parent=51 // pred_region
          %s1923 = ssub.s32 16, 16
          %1924 = vsyncadd %s1900, %s1923
          %s1925 = smul.addr %s38, 16
          %s1926 = scalar_lea.hbm %s9, %s1925
          %s1928 = sshll.u32 %s1902, 4
          %s1929 = int_to_ptr.vmem [resolvable:$true] %s1928
          %1931 = dma.vmem_to_hbm [thread:$0]  %s1929, 16, %s1926, %s1900
        $region100: #{tpu_custom_call.1} parent=51 // pred_fallthru
          _
      $region52: #{tpu_custom_call.1} parent=5 // pred_fallthru
        _
      %p1932 = scmp.le.s32.totalorder 2, %s29
      // Predicated region
      $region101: #{tpu_custom_call.1} parent=5 // pred_check
        %p1933 = pneg %p1932
      $region102: #{tpu_custom_call.1} parent=5 // pred_check_branch
        %1935 = sbr.rel (%p1933) target = $region104
      $region103: #{tpu_custom_call.1} parent=5 // pred_region
        %s1936 = ssub.s32 %s29, 2
        // Predicated region
        $region105: #{tpu_custom_call.1} parent=103 // pred_check
          %p1937 = pneg %p245
        $region106: #{tpu_custom_call.1} parent=103 // pred_check_branch
          %1939 = sbr.rel (%p1937) target = $region108
        $region107: #{tpu_custom_call.1} parent=103 // pred_region
          %s1940 = sand.u32 %s230, 1
          %s1941 = scalar_lea.sflag [#allocation5], %s1940
          %s1942 = sand.u32 %s230, 1
          %s1943 = smul.addr %s1942, 64
          %s1944 = scalar_lea.vmem [#allocation17], %s1943
          %1945 = dma.done %s1941, 1024
        $region108: #{tpu_custom_call.1} parent=103 // pred_fallthru
          _
        // Predicated region
        $region109: #{tpu_custom_call.1} parent=103 // pred_check
          %p1946 = pneg %p271
        $region110: #{tpu_custom_call.1} parent=103 // pred_check_branch
          %1948 = sbr.rel (%p1946) target = $region112
        $region111: #{tpu_custom_call.1} parent=103 // pred_region
          %s1949 = sand.u32 %s256, 1
          %s1950 = scalar_lea.sflag [#allocation19], %s1949
          %s1951 = sand.u32 %s256, 1
          %s1952 = scalar_lea.vmem [#allocation18], %s1951
          %1953 = dma.done %s1950, 16
        $region112: #{tpu_custom_call.1} parent=103 // pred_fallthru
          _
      $region104: #{tpu_custom_call.1} parent=5 // pred_fallthru
        _
    $region6: #{tpu_custom_call.1} parent=1 // loop_footer
      %s33 = sadd.s32 1, %s29
    $region7: #{tpu_custom_call.1} parent=1 // loop_footer_branch
      %28 = sbr.rel target = $region3
    $region8: #{tpu_custom_call.1} parent=1 // loop_exit
      _
    %1954 = vsyncpa [#allocation4], 1
    %s1955 = scalar_lea.sflag [#allocation4], 1
    %1956 = vsyncpa %s1955, 1
    %1957 = vsyncpa [#allocation7], 1
    %1958 = vsyncpa [#allocation10], 1
    %1959 = vsyncpa [#allocation13], 1
    %1960 = vsyncpa [#allocation16], 1
    %1961 = vsyncpa [#allocation5], 1
    %s1962 = scalar_lea.sflag [#allocation5], 1
    %1963 = vsyncpa %s1962, 1
    %1964 = vsyncpa [#allocation19], 1
    %s1965 = scalar_lea.sflag [#allocation19], 1
    %1966 = vsyncpa %s1965, 1

</llo_original>
